<compile_context>
chip_gen: v7x
topology: tpu7x:2x2x1
jax: 0.10.0
libtpu: 0.0.40
codegen_flags: <defaults>
</compile_context>

<pallas_src>
import math
import functools

import jax
import jax.numpy as jnp
from jax import lax
from jax.experimental import pallas as pl
from jax.experimental.pallas import tpu as pltpu


def _attention_kernel(xq_ref, xf_ref, wq_ref, bq_ref, wkv_ref, bkv_ref,
                      wo_ref, bo_ref, o_ref, kv_ref,
                      *, n_heads, d_head, q_block, seq_len,
                      neg_inf, inv_scale):
    H, Dh, Tq, S = n_heads, d_head, q_block, seq_len
    HDh = H * Dh
    qi = pl.program_id(1)

    # K/V for the whole sequence: computed once per batch element and held in
    # VMEM scratch across all query tiles (query-tile axis is "arbitrary").
    @pl.when(qi == 0)
    def _():
        xf = xf_ref[0]                                              # (S, D)
        kv_ref[...] = (
            jnp.dot(xf, wkv_ref[...], preferred_element_type=jnp.float32)
            + bkv_ref[...]
        )                                                           # (S, 2*H*Dh)

    # Q projection for this query tile: one lane-dense matmul for all heads.
    q_all = (
        jnp.dot(xq_ref[0], wq_ref[...], preferred_element_type=jnp.float32)
        + bq_ref[...]
    )                                                               # (Tq, H*Dh)
    kv = kv_ref[...]                                                # (S, 2*H*Dh)

    # Causal mask for this tile (global query index = qi*Tq + local row).
    q_pos = qi * Tq + lax.broadcasted_iota(jnp.int32, (Tq, S), 0)
    k_pos = lax.broadcasted_iota(jnp.int32, (Tq, S), 1)
    causal = k_pos > q_pos

    z_parts = []
    for h in range(H):                                              # static unroll
        q_h = q_all[:, h * Dh:(h + 1) * Dh]                         # (Tq, Dh)
        k_h = kv[:, h * Dh:(h + 1) * Dh]                            # (S, Dh)
        v_h = kv[:, HDh + h * Dh:HDh + (h + 1) * Dh]                # (S, Dh)

        # q @ k^T as a direct contraction (no transpose materialized).
        logits = lax.dot_general(
            q_h, k_h, (((1,), (1,)), ((), ())),
            preferred_element_type=jnp.float32) * inv_scale          # (Tq, S)
        masked = jnp.where(causal, neg_inf, logits)

        m = jnp.max(masked, axis=-1, keepdims=True)
        e = jnp.exp(masked - m)
        attn = e / jnp.sum(e, axis=-1, keepdims=True)

        z_parts.append(
            jnp.dot(attn, v_h, preferred_element_type=jnp.float32))  # (Tq, Dh)

    z = jnp.concatenate(z_parts, axis=-1)                           # (Tq, H*Dh)

    out = (
        jnp.dot(z, wo_ref[...], preferred_element_type=jnp.float32)
        + bo_ref[...]
    )                                                               # (Tq, D)
    o_ref[0] = out.astype(o_ref.dtype)


def attention_forward(x, W_Q, W_K, W_V, W_O, b_Q, b_K, b_V, b_O, *, q_block=None):
    B, S, D = x.shape
    H, _, Dh = W_Q.shape
    HDh = H * Dh

    if q_block is None:
        q_block = S if S <= 128 else next(
            (t for t in (512, 256, 128) if S % t == 0), S)
    assert S % q_block == 0 and (q_block == S or q_block % 8 == 0)
    n_q_tiles = S // q_block

    # Head-fused, lane-dense weight/bias layouts (pure layout plumbing in JAX).
    Wq_f = jnp.transpose(W_Q, (1, 0, 2)).reshape(D, HDh)            # (D, H*Dh)
    Wk_f = jnp.transpose(W_K, (1, 0, 2)).reshape(D, HDh)
    Wv_f = jnp.transpose(W_V, (1, 0, 2)).reshape(D, HDh)
    Wkv_f = jnp.concatenate([Wk_f, Wv_f], axis=1)                   # (D, 2*H*Dh)
    bq_f = b_Q.reshape(1, HDh)
    bkv_f = jnp.concatenate([b_K.reshape(1, HDh), b_V.reshape(1, HDh)], axis=1)
    Wo_f = W_O.reshape(HDh, D)                                      # (H*Dh, D)
    bo_f = b_O.reshape(1, D)

    kernel = functools.partial(
        _attention_kernel,
        n_heads=H, d_head=Dh, q_block=q_block, seq_len=S,
        neg_inf=-100000.0, inv_scale=1.0 / math.sqrt(float(Dh)))

    grid_spec = pltpu.PrefetchScalarGridSpec(
        num_scalar_prefetch=0,
        grid=(B, n_q_tiles),
        in_specs=[
            pl.BlockSpec((1, q_block, D), lambda b, qi: (b, qi, 0)),  # x (query tile)
            pl.BlockSpec((1, S, D), lambda b, qi: (b, 0, 0)),         # x (full, for K/V)
            pl.BlockSpec((D, HDh), lambda b, qi: (0, 0)),             # W_Q fused
            pl.BlockSpec((1, HDh), lambda b, qi: (0, 0)),             # b_Q fused
            pl.BlockSpec((D, 2 * HDh), lambda b, qi: (0, 0)),         # W_K|W_V fused
            pl.BlockSpec((1, 2 * HDh), lambda b, qi: (0, 0)),         # b_K|b_V fused
            pl.BlockSpec((HDh, D), lambda b, qi: (0, 0)),             # W_O fused
            pl.BlockSpec((1, D), lambda b, qi: (0, 0)),               # b_O
        ],
        out_specs=pl.BlockSpec((1, q_block, D), lambda b, qi: (b, qi, 0)),
        scratch_shapes=[pltpu.VMEM((S, 2 * HDh), jnp.float32)],       # resident K|V
    )

    return pl.pallas_call(
        kernel,
        out_shape=jax.ShapeDtypeStruct((B, S, D), jnp.float32),
        grid_spec=grid_spec,
        compiler_params=pltpu.CompilerParams(
            dimension_semantics=("parallel", "arbitrary"),
            vmem_limit_bytes=64 * 1024 * 1024),
    )(x, x, Wq_f, bq_f, Wkv_f, bkv_f, Wo_f, bo_f)


def attention_reference(x, W_Q, W_K, W_V, W_O, b_Q, b_K, b_V, b_O):
    """Plain-JAX mirror of the PyTorch forward, used for verification."""
    Dh = W_Q.shape[-1]
    Q = jnp.einsum('bpd,hde->bphe', x, W_Q) + b_Q
    K = jnp.einsum('bpd,hde->bphe', x, W_K) + b_K
    V = jnp.einsum('bpd,hde->bphe', x, W_V) + b_V
    logits = jnp.einsum('bqhe,bkhe->bhqk', Q, K) / (Dh ** 0.5)
    S = logits.shape[-1]
    tri = jnp.triu(jnp.ones((S, S), dtype=logits.dtype), k=1)
    logits = jnp.where(tri > 0, -100000.0, logits)
    attn = jax.nn.softmax(logits, axis=-1)
    z = jnp.einsum('bkhe,bhqk->bqhe', V, attn)
    result = jnp.einsum('bqhe,hed->bqhd', z, W_O)
    return result.sum(axis=-2) + b_O


def _make_inputs(key, batch, seq, d_model, n_heads, d_head, init_range=0.02):
    kx, kq, kk, kv, ko, kbq, kbk, kbv, kbo = jax.random.split(key, 9)
    x = jax.random.normal(kx, (batch, seq, d_model), dtype=jnp.float32)
    W_Q = init_range * jax.random.normal(kq, (n_heads, d_model, d_head), dtype=jnp.float32)
    W_K = init_range * jax.random.normal(kk, (n_heads, d_model, d_head), dtype=jnp.float32)
    W_V = init_range * jax.random.normal(kv, (n_heads, d_model, d_head), dtype=jnp.float32)
    W_O = init_range * jax.random.normal(ko, (n_heads, d_head, d_model), dtype=jnp.float32)
    b_Q = init_range * jax.random.normal(kbq, (n_heads, d_head), dtype=jnp.float32)
    b_K = init_range * jax.random.normal(kbk, (n_heads, d_head), dtype=jnp.float32)
    b_V = init_range * jax.random.normal(kbv, (n_heads, d_head), dtype=jnp.float32)
    b_O = init_range * jax.random.normal(kbo, (d_model,), dtype=jnp.float32)
    return x, W_Q, W_K, W_V, W_O, b_Q, b_K, b_V, b_O


if __name__ == "__main__":
    key = jax.random.PRNGKey(0)
    k1, k2 = jax.random.split(key)

    # Config A: single query tile (q_block == seq).
    args_a = _make_inputs(k1, batch=2, seq=8, d_model=32, n_heads=4, d_head=16)
    out_a = jax.block_until_ready(attention_forward(*args_a))
    ref_a = attention_reference(*args_a)
    assert out_a.shape == ref_a.shape
    assert jnp.allclose(out_a, ref_a, atol=1e-5, rtol=1e-5), "mismatch (config A)"

    # Config B: two query tiles per batch element (exercises the resident
    # K/V scratch and the causal-mask tile offset).
    args_b = _make_inputs(k2, batch=2, seq=16, d_model=32, n_heads=4, d_head=16)
    out_b = jax.block_until_ready(attention_forward(*args_b, q_block=8))
    ref_b = attention_reference(*args_b)
    assert out_b.shape == ref_b.shape
    assert jnp.allclose(out_b, ref_b, atol=1e-5, rtol=1e-5), "mismatch (config B)"

    print("KERNEL_OK")
</pallas_src>

<mosaic_0001>
module attributes {stable_mosaic.version = 11 : i64} {
  func.func @_attention_kernel(%arg0: i32, %arg1: i32, %arg2: memref<1x8x32xf32, #tpu.memory_space<vmem>>, %arg3: memref<1x8x32xf32, #tpu.memory_space<vmem>>, %arg4: memref<32x64xf32, #tpu.memory_space<vmem>>, %arg5: memref<1x64xf32, #tpu.memory_space<vmem>>, %arg6: memref<32x128xf32, #tpu.memory_space<vmem>>, %arg7: memref<1x128xf32, #tpu.memory_space<vmem>>, %arg8: memref<64x32xf32, #tpu.memory_space<vmem>>, %arg9: memref<1x32xf32, #tpu.memory_space<vmem>>, %arg10: memref<1x8x32xf32, #tpu.memory_space<vmem>>, %arg11: memref<8x128xf32, #tpu.memory_space<vmem>>) attributes {dimension_semantics = [#tpu.dimension_semantics<parallel>, #tpu.dimension_semantics<arbitrary>], iteration_bounds = array<i64: 2, 1>, scalar_prefetch = 0 : i64, scratch_operands = 1 : i64, tpu.core_type = #tpu.core_type<tc>, window_params = [{transform_indices = @transform_0, window_bounds = array<i64: 1, 8, 32>}, {transform_indices = @transform_1, window_bounds = array<i64: 1, 8, 32>}, {pipeline_mode = #tpu.pipeline_mode<synchronous>, transform_indices = @transform_2, window_bounds = array<i64: 32, 64>}, {pipeline_mode = #tpu.pipeline_mode<synchronous>, transform_indices = @transform_3, window_bounds = array<i64: 1, 64>}, {pipeline_mode = #tpu.pipeline_mode<synchronous>, transform_indices = @transform_4, window_bounds = array<i64: 32, 128>}, {pipeline_mode = #tpu.pipeline_mode<synchronous>, transform_indices = @transform_5, window_bounds = array<i64: 1, 128>}, {pipeline_mode = #tpu.pipeline_mode<synchronous>, transform_indices = @transform_6, window_bounds = array<i64: 64, 32>}, {pipeline_mode = #tpu.pipeline_mode<synchronous>, transform_indices = @transform_7, window_bounds = array<i64: 1, 32>}, {transform_indices = @transform_8, window_bounds = array<i64: 1, 8, 32>}]} {
    %c0_i32 = arith.constant 0 : i32
    %0 = arith.cmpi eq, %arg1, %c0_i32 : i32
    %1 = arith.extui %0 : i1 to i32
    %c0_i32_0 = arith.constant 0 : i32
    %2 = arith.cmpi ne, %1, %c0_i32_0 : i32
    scf.if %2 {
      %c0_41 = arith.constant 0 : index
      %c0_42 = arith.constant 0 : index
      %c0_43 = arith.constant 0 : index
      %98 = vector.load %arg3[%c0_41, %c0_42, %c0_43] : memref<1x8x32xf32, #tpu.memory_space<vmem>>, vector<1x8x32xf32>
      %99 = vector.shape_cast %98 : vector<1x8x32xf32> to vector<8x32xf32>
      %c0_44 = arith.constant 0 : index
      %c0_45 = arith.constant 0 : index
      %100 = vector.load %arg6[%c0_44, %c0_45] : memref<32x128xf32, #tpu.memory_space<vmem>>, vector<32x128xf32>
      %cst_46 = arith.constant dense<0.000000e+00> : vector<8x128xf32>
      %101 = tpu.matmul %99, %100, %cst_46 {dimension_numbers = #tpu.dot_dimension_numbers<[1], [0], [0], [1], [0, 0, 1, 1], [], []>} : vector<8x32xf32>, vector<32x128xf32>, vector<8x128xf32> -> vector<8x128xf32>
      %c0_47 = arith.constant 0 : index
      %c0_48 = arith.constant 0 : index
      %102 = vector.load %arg7[%c0_47, %c0_48] : memref<1x128xf32, #tpu.memory_space<vmem>>, vector<1x128xf32>
      %103 = vector.broadcast %102 : vector<1x128xf32> to vector<8x128xf32>
      %104 = arith.addf %101, %103 : vector<8x128xf32>
      %c0_49 = arith.constant 0 : index
      %c0_50 = arith.constant 0 : index
      %105 = vector.load %arg11[%c0_49, %c0_50] : memref<8x128xf32, #tpu.memory_space<vmem>>, vector<8x128xf32>
      tpu.vector_store %arg11[%c0_49, %c0_50], %104 {strides = array<i32>} : memref<8x128xf32, #tpu.memory_space<vmem>>, vector<8x128xf32>,
    } else {
    }
    %c0 = arith.constant 0 : index
    %c0_1 = arith.constant 0 : index
    %c0_2 = arith.constant 0 : index
    %3 = vector.load %arg2[%c0, %c0_1, %c0_2] : memref<1x8x32xf32, #tpu.memory_space<vmem>>, vector<1x8x32xf32>
    %4 = vector.shape_cast %3 : vector<1x8x32xf32> to vector<8x32xf32>
    %c0_3 = arith.constant 0 : index
    %c0_4 = arith.constant 0 : index
    %5 = vector.load %arg4[%c0_3, %c0_4] : memref<32x64xf32, #tpu.memory_space<vmem>>, vector<32x64xf32>
    %cst = arith.constant dense<0.000000e+00> : vector<8x64xf32>
    %6 = tpu.matmul %4, %5, %cst {dimension_numbers = #tpu.dot_dimension_numbers<[1], [0], [0], [1], [0, 0, 1, 1], [], []>} : vector<8x32xf32>, vector<32x64xf32>, vector<8x64xf32> -> vector<8x64xf32>
    %c0_5 = arith.constant 0 : index
    %c0_6 = arith.constant 0 : index
    %7 = vector.load %arg5[%c0_5, %c0_6] : memref<1x64xf32, #tpu.memory_space<vmem>>, vector<1x64xf32>
    %8 = vector.broadcast %7 : vector<1x64xf32> to vector<8x64xf32>
    %9 = arith.addf %6, %8 : vector<8x64xf32>
    %c0_7 = arith.constant 0 : index
    %c0_8 = arith.constant 0 : index
    %10 = vector.load %arg11[%c0_7, %c0_8] : memref<8x128xf32, #tpu.memory_space<vmem>>, vector<8x128xf32>
    %c8_i32 = arith.constant 8 : i32
    %11 = arith.muli %arg1, %c8_i32 : i32
    %12 = tpu.iota {dimensions = array<i32: 0>} : vector<8x8xi32>
    %13 = vector.broadcast %11 : i32 to vector<8x8xi32>
    %14 = arith.addi %13, %12 : vector<8x8xi32>
    %15 = tpu.iota {dimensions = array<i32: 1>} : vector<8x8xi32>
    %16 = arith.cmpi sgt, %15, %14 : vector<8x8xi32>
    %17 = vector.extract_strided_slice %9 {offsets = [0, 0], sizes = [8, 16], strides = [1, 1]} : vector<8x64xf32> to vector<8x16xf32>
    %18 = vector.extract_strided_slice %10 {offsets = [0, 0], sizes = [8, 16], strides = [1, 1]} : vector<8x128xf32> to vector<8x16xf32>
    %19 = vector.extract_strided_slice %10 {offsets = [0, 64], sizes = [8, 16], strides = [1, 1]} : vector<8x128xf32> to vector<8x16xf32>
    %cst_9 = arith.constant dense<0.000000e+00> : vector<8x8xf32>
    %20 = tpu.matmul %17, %18, %cst_9 {dimension_numbers = #tpu.dot_dimension_numbers<[1], [1], [0], [0], [0, 0, 1, 0], [], []>} : vector<8x16xf32>, vector<8x16xf32>, vector<8x8xf32> -> vector<8x8xf32>
    %cst_10 = arith.constant 2.500000e-01 : f32
    %21 = vector.broadcast %cst_10 : f32 to vector<8x8xf32>
    %22 = arith.mulf %20, %21 : vector<8x8xf32>
    %cst_11 = arith.constant -1.000000e+05 : f32
    %23 = vector.broadcast %cst_11 : f32 to vector<8x8xf32>
    %24 = arith.select %16, %23, %22 : vector<8x8xi1>, vector<8x8xf32>
    %cst_12 = arith.constant dense<0xFF800000> : vector<8xf32>
    %25 = vector.multi_reduction <maximumf>, %24, %cst_12 [1] : vector<8x8xf32> to vector<8xf32>
    %26 = vector.shape_cast %25 : vector<8xf32> to vector<8x1xf32>
    %27 = vector.broadcast %26 : vector<8x1xf32> to vector<8x8xf32>
    %28 = arith.subf %24, %27 : vector<8x8xf32>
    %29 = math.exp %28 : vector<8x8xf32>
    %cst_13 = arith.constant dense<0.000000e+00> : vector<8xf32>
    %30 = vector.multi_reduction <add>, %29, %cst_13 [1] : vector<8x8xf32> to vector<8xf32>
    %31 = vector.shape_cast %30 : vector<8xf32> to vector<8x1xf32>
    %32 = vector.broadcast %31 : vector<8x1xf32> to vector<8x8xf32>
    %33 = arith.divf %29, %32 : vector<8x8xf32>
    %cst_14 = arith.constant dense<0.000000e+00> : vector<8x16xf32>
    %34 = tpu.matmul %33, %19, %cst_14 {dimension_numbers = #tpu.dot_dimension_numbers<[1], [0], [0], [1], [0, 0, 1, 1], [], []>} : vector<8x8xf32>, vector<8x16xf32>, vector<8x16xf32> -> vector<8x16xf32>
    %35 = vector.extract_strided_slice %9 {offsets = [0, 16], sizes = [8, 16], strides = [1, 1]} : vector<8x64xf32> to vector<8x16xf32>
    %36 = vector.extract_strided_slice %10 {offsets = [0, 16], sizes = [8, 16], strides = [1, 1]} : vector<8x128xf32> to vector<8x16xf32>
    %37 = vector.extract_strided_slice %10 {offsets = [0, 80], sizes = [8, 16], strides = [1, 1]} : vector<8x128xf32> to vector<8x16xf32>
    %cst_15 = arith.constant dense<0.000000e+00> : vector<8x8xf32>
    %38 = tpu.matmul %35, %36, %cst_15 {dimension_numbers = #tpu.dot_dimension_numbers<[1], [1], [0], [0], [0, 0, 1, 0], [], []>} : vector<8x16xf32>, vector<8x16xf32>, vector<8x8xf32> -> vector<8x8xf32>
    %cst_16 = arith.constant 2.500000e-01 : f32
    %39 = vector.broadcast %cst_16 : f32 to vector<8x8xf32>
    %40 = arith.mulf %38, %39 : vector<8x8xf32>
    %cst_17 = arith.constant -1.000000e+05 : f32
    %41 = vector.broadcast %cst_17 : f32 to vector<8x8xf32>
    %42 = arith.select %16, %41, %40 : vector<8x8xi1>, vector<8x8xf32>
    %cst_18 = arith.constant dense<0xFF800000> : vector<8xf32>
    %43 = vector.multi_reduction <maximumf>, %42, %cst_18 [1] : vector<8x8xf32> to vector<8xf32>
    %44 = vector.shape_cast %43 : vector<8xf32> to vector<8x1xf32>
    %45 = vector.broadcast %44 : vector<8x1xf32> to vector<8x8xf32>
    %46 = arith.subf %42, %45 : vector<8x8xf32>
    %47 = math.exp %46 : vector<8x8xf32>
    %cst_19 = arith.constant dense<0.000000e+00> : vector<8xf32>
    %48 = vector.multi_reduction <add>, %47, %cst_19 [1] : vector<8x8xf32> to vector<8xf32>
    %49 = vector.shape_cast %48 : vector<8xf32> to vector<8x1xf32>
    %50 = vector.broadcast %49 : vector<8x1xf32> to vector<8x8xf32>
    %51 = arith.divf %47, %50 : vector<8x8xf32>
    %cst_20 = arith.constant dense<0.000000e+00> : vector<8x16xf32>
    %52 = tpu.matmul %51, %37, %cst_20 {dimension_numbers = #tpu.dot_dimension_numbers<[1], [0], [0], [1], [0, 0, 1, 1], [], []>} : vector<8x8xf32>, vector<8x16xf32>, vector<8x16xf32> -> vector<8x16xf32>
    %53 = vector.extract_strided_slice %9 {offsets = [0, 32], sizes = [8, 16], strides = [1, 1]} : vector<8x64xf32> to vector<8x16xf32>
    %54 = vector.extract_strided_slice %10 {offsets = [0, 32], sizes = [8, 16], strides = [1, 1]} : vector<8x128xf32> to vector<8x16xf32>
    %55 = vector.extract_strided_slice %10 {offsets = [0, 96], sizes = [8, 16], strides = [1, 1]} : vector<8x128xf32> to vector<8x16xf32>
    %cst_21 = arith.constant dense<0.000000e+00> : vector<8x8xf32>
    %56 = tpu.matmul %53, %54, %cst_21 {dimension_numbers = #tpu.dot_dimension_numbers<[1], [1], [0], [0], [0, 0, 1, 0], [], []>} : vector<8x16xf32>, vector<8x16xf32>, vector<8x8xf32> -> vector<8x8xf32>
    %cst_22 = arith.constant 2.500000e-01 : f32
    %57 = vector.broadcast %cst_22 : f32 to vector<8x8xf32>
    %58 = arith.mulf %56, %57 : vector<8x8xf32>
    %cst_23 = arith.constant -1.000000e+05 : f32
    %59 = vector.broadcast %cst_23 : f32 to vector<8x8xf32>
    %60 = arith.select %16, %59, %58 : vector<8x8xi1>, vector<8x8xf32>
    %cst_24 = arith.constant dense<0xFF800000> : vector<8xf32>
    %61 = vector.multi_reduction <maximumf>, %60, %cst_24 [1] : vector<8x8xf32> to vector<8xf32>
    %62 = vector.shape_cast %61 : vector<8xf32> to vector<8x1xf32>
    %63 = vector.broadcast %62 : vector<8x1xf32> to vector<8x8xf32>
    %64 = arith.subf %60, %63 : vector<8x8xf32>
    %65 = math.exp %64 : vector<8x8xf32>
    %cst_25 = arith.constant dense<0.000000e+00> : vector<8xf32>
    %66 = vector.multi_reduction <add>, %65, %cst_25 [1] : vector<8x8xf32> to vector<8xf32>
    %67 = vector.shape_cast %66 : vector<8xf32> to vector<8x1xf32>
    %68 = vector.broadcast %67 : vector<8x1xf32> to vector<8x8xf32>
    %69 = arith.divf %65, %68 : vector<8x8xf32>
    %cst_26 = arith.constant dense<0.000000e+00> : vector<8x16xf32>
    %70 = tpu.matmul %69, %55, %cst_26 {dimension_numbers = #tpu.dot_dimension_numbers<[1], [0], [0], [1], [0, 0, 1, 1], [], []>} : vector<8x8xf32>, vector<8x16xf32>, vector<8x16xf32> -> vector<8x16xf32>
    %71 = vector.extract_strided_slice %9 {offsets = [0, 48], sizes = [8, 16], strides = [1, 1]} : vector<8x64xf32> to vector<8x16xf32>
    %72 = vector.extract_strided_slice %10 {offsets = [0, 48], sizes = [8, 16], strides = [1, 1]} : vector<8x128xf32> to vector<8x16xf32>
    %73 = vector.extract_strided_slice %10 {offsets = [0, 112], sizes = [8, 16], strides = [1, 1]} : vector<8x128xf32> to vector<8x16xf32>
    %cst_27 = arith.constant dense<0.000000e+00> : vector<8x8xf32>
    %74 = tpu.matmul %71, %72, %cst_27 {dimension_numbers = #tpu.dot_dimension_numbers<[1], [1], [0], [0], [0, 0, 1, 0], [], []>} : vector<8x16xf32>, vector<8x16xf32>, vector<8x8xf32> -> vector<8x8xf32>
    %cst_28 = arith.constant 2.500000e-01 : f32
    %75 = vector.broadcast %cst_28 : f32 to vector<8x8xf32>
    %76 = arith.mulf %74, %75 : vector<8x8xf32>
    %cst_29 = arith.constant -1.000000e+05 : f32
    %77 = vector.broadcast %cst_29 : f32 to vector<8x8xf32>
    %78 = arith.select %16, %77, %76 : vector<8x8xi1>, vector<8x8xf32>
    %cst_30 = arith.constant dense<0xFF800000> : vector<8xf32>
    %79 = vector.multi_reduction <maximumf>, %78, %cst_30 [1] : vector<8x8xf32> to vector<8xf32>
    %80 = vector.shape_cast %79 : vector<8xf32> to vector<8x1xf32>
    %81 = vector.broadcast %80 : vector<8x1xf32> to vector<8x8xf32>
    %82 = arith.subf %78, %81 : vector<8x8xf32>
    %83 = math.exp %82 : vector<8x8xf32>
    %cst_31 = arith.constant dense<0.000000e+00> : vector<8xf32>
    %84 = vector.multi_reduction <add>, %83, %cst_31 [1] : vector<8x8xf32> to vector<8xf32>
    %85 = vector.shape_cast %84 : vector<8xf32> to vector<8x1xf32>
    %86 = vector.broadcast %85 : vector<8x1xf32> to vector<8x8xf32>
    %87 = arith.divf %83, %86 : vector<8x8xf32>
    %cst_32 = arith.constant dense<0.000000e+00> : vector<8x16xf32>
    %88 = tpu.matmul %87, %73, %cst_32 {dimension_numbers = #tpu.dot_dimension_numbers<[1], [0], [0], [1], [0, 0, 1, 1], [], []>} : vector<8x8xf32>, vector<8x16xf32>, vector<8x16xf32> -> vector<8x16xf32>
    %89 = tpu.concatenate %34, %52, %70, %88 in 1 : vector<8x16xf32>, vector<8x16xf32>, vector<8x16xf32>, vector<8x16xf32> -> vector<8x64xf32>
    %c0_33 = arith.constant 0 : index
    %c0_34 = arith.constant 0 : index
    %90 = vector.load %arg8[%c0_33, %c0_34] : memref<64x32xf32, #tpu.memory_space<vmem>>, vector<64x32xf32>
    %cst_35 = arith.constant dense<0.000000e+00> : vector<8x32xf32>
    %91 = tpu.matmul %89, %90, %cst_35 {dimension_numbers = #tpu.dot_dimension_numbers<[1], [0], [0], [1], [0, 0, 1, 1], [], []>} : vector<8x64xf32>, vector<64x32xf32>, vector<8x32xf32> -> vector<8x32xf32>
    %c0_36 = arith.constant 0 : index
    %c0_37 = arith.constant 0 : index
    %92 = vector.load %arg9[%c0_36, %c0_37] : memref<1x32xf32, #tpu.memory_space<vmem>>, vector<1x32xf32>
    %93 = vector.broadcast %92 : vector<1x32xf32> to vector<8x32xf32>
    %94 = arith.addf %91, %93 : vector<8x32xf32>
    %c0_38 = arith.constant 0 : index
    %c0_39 = arith.constant 0 : index
    %c0_40 = arith.constant 0 : index
    %95 = vector.load %arg10[%c0_38, %c0_39, %c0_40] : memref<1x8x32xf32, #tpu.memory_space<vmem>>, vector<1x8x32xf32>
    %96 = vector.shape_cast %95 : vector<1x8x32xf32> to vector<8x32xf32>
    %97 = vector.shape_cast %94 : vector<8x32xf32> to vector<1x8x32xf32>
    tpu.vector_store %arg10[%c0_38, %c0_39, %c0_40], %97 {strides = array<i32>} : memref<1x8x32xf32, #tpu.memory_space<vmem>>, vector<1x8x32xf32>,
    return
  }
  func.func @transform_0(%arg0: i32, %arg1: i32) -> (i32, i32, i32) {
    %c0_i32 = arith.constant 0 : i32
    %c0_i32_0 = arith.constant 0 : i32
    return %arg0, %arg1, %c0_i32 : i32, i32, i32
  }
  func.func @transform_1(%arg0: i32, %arg1: i32) -> (i32, i32, i32) {
    %c0_i32 = arith.constant 0 : i32
    %c0_i32_0 = arith.constant 0 : i32
    %c0_i32_1 = arith.constant 0 : i32
    return %arg0, %c0_i32, %c0_i32_0 : i32, i32, i32
  }
  func.func @transform_2(%arg0: i32, %arg1: i32) -> (i32, i32) {
    %c0_i32 = arith.constant 0 : i32
    %c0_i32_0 = arith.constant 0 : i32
    %c0_i32_1 = arith.constant 0 : i32
    return %c0_i32, %c0_i32_0 : i32, i32
  }
  func.func @transform_3(%arg0: i32, %arg1: i32) -> (i32, i32) {
    %c0_i32 = arith.constant 0 : i32
    %c0_i32_0 = arith.constant 0 : i32
    %c0_i32_1 = arith.constant 0 : i32
    return %c0_i32, %c0_i32_0 : i32, i32
  }
  func.func @transform_4(%arg0: i32, %arg1: i32) -> (i32, i32) {
    %c0_i32 = arith.constant 0 : i32
    %c0_i32_0 = arith.constant 0 : i32
    %c0_i32_1 = arith.constant 0 : i32
    return %c0_i32, %c0_i32_0 : i32, i32
  }
  func.func @transform_5(%arg0: i32, %arg1: i32) -> (i32, i32) {
    %c0_i32 = arith.constant 0 : i32
    %c0_i32_0 = arith.constant 0 : i32
    %c0_i32_1 = arith.constant 0 : i32
    return %c0_i32, %c0_i32_0 : i32, i32
  }
  func.func @transform_6(%arg0: i32, %arg1: i32) -> (i32, i32) {
    %c0_i32 = arith.constant 0 : i32
    %c0_i32_0 = arith.constant 0 : i32
    %c0_i32_1 = arith.constant 0 : i32
    return %c0_i32, %c0_i32_0 : i32, i32
  }
  func.func @transform_7(%arg0: i32, %arg1: i32) -> (i32, i32) {
    %c0_i32 = arith.constant 0 : i32
    %c0_i32_0 = arith.constant 0 : i32
    %c0_i32_1 = arith.constant 0 : i32
    return %c0_i32, %c0_i32_0 : i32, i32
  }
  func.func @transform_8(%arg0: i32, %arg1: i32) -> (i32, i32, i32) {
    %c0_i32 = arith.constant 0 : i32
    %c0_i32_0 = arith.constant 0 : i32
    return %arg0, %arg1, %c0_i32 : i32, i32, i32
  }
}

</mosaic_0001>

<llo_original>
// kernel: tpu_custom_call.1
$region0: #{tpu_custom_call.1}
  #allocation0 [shape = 'u32[]', space=smem, size = 0x4, offset = 0x4, fixed_abs, tag = 'smem constant byte address 0x4 - core index']
  #allocation1 [shape = 'u32[144,128]{1,0:T(1,128)}', space=vmem, size = 0x12000, scoped, tag = 'internal scratch']
  #allocation2 [shape = 'f32[8,128]{1,0:T(8,128)}', space=vmem, size = 0x1000, scoped, tag = 'scratch operand']
  %s0 = inlined_call_operand.hbm [shape: f32[2,8,32], index: 0, kind: input, shape index: {}]
  %s1 = inlined_call_operand.hbm [shape: f32[2,8,32], index: 1, kind: input, shape index: {}]
  %s2 = inlined_call_operand.hbm [shape: f32[32,64], index: 2, kind: input, shape index: {}]
  %s3 = inlined_call_operand.hbm [shape: f32[1,64], index: 3, kind: input, shape index: {}]
  %s4 = inlined_call_operand.hbm [shape: f32[32,128], index: 4, kind: input, shape index: {}]
  %s5 = inlined_call_operand.hbm [shape: f32[1,128], index: 5, kind: input, shape index: {}]
  %s6 = inlined_call_operand.hbm [shape: f32[64,32], index: 6, kind: input, shape index: {}]
  %s7 = inlined_call_operand.hbm [shape: f32[1,32], index: 7, kind: input, shape index: {}]
  %s8 = inlined_call_operand.hbm [shape: f32[2,8,32], index: 8, kind: output, shape index: {}]
  %s9 = sld [smem:[#allocation0]]
  $region101: #{tpu_custom_call.1} parent=0
    _
  %s11 = ssub.s32 1, %s9
  %s12 = scalar_select 0, %s11, %s9
  $region1: #{tpu_custom_call.1} parent=0
    #allocation3 [shape = 'u8[8192]{0}', space=vmem, size = 0x2000, scoped, tag = 'input window, operand 0']
    #allocation4 [shape = 's32[2]{0}', space=sflag, size = 0x8, scoped, tag = 'scoped memory for tpu_custom_call.1']
    #allocation5 [shape = 's32[2]{0}', space=sflag, size = 0x8, scoped, tag = 'scoped memory for tpu_custom_call.1']
    #allocation6 [shape = 'u8[8192]{0}', space=vmem, size = 0x2000, scoped, tag = 'input window, operand 1']
    #allocation7 [shape = 's32[2]{0}', space=sflag, size = 0x8, scoped, tag = 'scoped memory for tpu_custom_call.1']
    #allocation8 [shape = 'u8[16384]{0}', space=vmem, size = 0x4000, scoped, tag = 'input window, operand 2, single buffered']
    #allocation9 [shape = 'u8[512]{0}', space=vmem, size = 0x400, scoped, tag = 'input window, operand 3, single buffered']
    #allocation10 [shape = 's32[1]{0}', space=sflag, size = 0x4, scoped, tag = 'scoped memory for tpu_custom_call.1']
    #allocation11 [shape = 'u8[16384]{0}', space=vmem, size = 0x4000, scoped, tag = 'input window, operand 4, single buffered']
    #allocation12 [shape = 'u8[512]{0}', space=vmem, size = 0x400, scoped, tag = 'input window, operand 5, single buffered']
    #allocation13 [shape = 's32[1]{0}', space=sflag, size = 0x4, scoped, tag = 'scoped memory for tpu_custom_call.1']
    #allocation14 [shape = 'u8[32768]{0}', space=vmem, size = 0x8000, scoped, tag = 'input window, operand 6, single buffered']
    #allocation15 [shape = 'u8[512]{0}', space=vmem, size = 0x400, scoped, tag = 'input window, operand 7, single buffered']
    #allocation16 [shape = 's32[1]{0}', space=sflag, size = 0x4, scoped, tag = 'scoped memory for tpu_custom_call.1']
    #allocation17 [shape = 'u8[8192]{0}', space=vmem, size = 0x2000, scoped, tag = 'output window, operand 0']
    %13 = vsyncpa [#allocation4], 0
    %s14 = scalar_lea.sflag [#allocation4], 1
    %15 = vsyncpa %s14, 0
    %16 = vsyncpa [#allocation7], 0
    %s17 = scalar_lea.sflag [#allocation7], 1
    %18 = vsyncpa %s17, 0
    %19 = vsyncpa [#allocation10], 0
    %20 = vsyncpa [#allocation13], 0
    %21 = vsyncpa [#allocation16], 0
    %22 = vsyncpa [#allocation5], 0
    %s23 = scalar_lea.sflag [#allocation5], 1
    %24 = vsyncpa %s23, 0
    loop: start=0, step=1, limit=4
    $region2: #{tpu_custom_call.1} parent=1 // loop_pre_header
      _
    $region3: #{tpu_custom_call.1} parent=1 // loop_header
      %s26 = sphi 0, %s30
      %p27 = scmp.ge.s32.totalorder %s26, 4
      %s33 = sphi 0, %s45
      %s34 = sphi 0, %s41
      %s35 = sphi 0, %s33
      %s36 = sphi 0, %s34
      %s37 = sphi 0, %s35
      %s38 = sphi 0, %s36
      %s50 = sphi 0, %s52
      %s53 = sphi 0, %s50
      %s54 = sphi 0, %s53
      %s70 = sphi 0, %s54
      %s76 = sphi 0, %s78
      %s79 = sphi 0, %s76
      %s80 = sphi 0, %s79
      %s96 = sphi 0, %s80
      %s100 = sphi 0, %s100
      %s102 = sphi 0, %s100
      %s103 = sphi 0, %s102
      %s117 = sphi 0, %s103
      %s121 = sphi 0, %s121
      %s123 = sphi 0, %s121
      %s124 = sphi 0, %s123
      %s138 = sphi 0, %s124
      %s142 = sphi 0, %s142
      %s144 = sphi 0, %s142
      %s145 = sphi 0, %s144
      %s159 = sphi 0, %s145
      %s163 = sphi 0, %s163
      %s165 = sphi 0, %s163
      %s166 = sphi 0, %s165
      %s180 = sphi 0, %s166
      %s184 = sphi 0, %s184
      %s186 = sphi 0, %s184
      %s187 = sphi 0, %s186
      %s201 = sphi 0, %s187
      %s205 = sphi 0, %s205
      %s207 = sphi 0, %s205
      %s208 = sphi 0, %s207
      %s222 = sphi 0, %s208
      %s230 = sphi 0, %s232
      %s233 = sphi 0, %s230
      %s234 = sphi 0, %s233
      %s250 = sphi 0, %s234
    $region4: #{tpu_custom_call.1} parent=1 // loop_header_branch
      %29 = sbr.rel (%p27) target = $region8
    $region5: #{tpu_custom_call.1} parent=1 // loop_body
      %s31 = ssub.s32 %s26, 1
      %s32 = ssub.s32 %s26, 2
      %s39 = sadd.s32 1, %s34
      %p40 = scmp.ge.s32.totalorder %s39, 1
      %s41 = scalar_select %p40, 0, %s39
      %s42 = sadd.s32 1, %s33
      %s43 = scalar_select %p40, %s42, %s33
      %p44 = scmp.ge.s32.totalorder %s43, 2
      %s45 = scalar_select %p44, 0, %s43
      %s46 = ssub.s32 %s33, %s45
      %s47 = ssub.s32 %s34, %s41
      %s48 = sor.u32 %s46, %s47
      %p49 = scmp.eq.s32.totalorder %s48, 0
      %s51 = sadd.s32 %s50, 1
      %s52 = scalar_select %p49, %s50, %s51
      %p55 = pneg %p49
      %p56 = scmp.eq.s32.totalorder %s26, 1
      %p57 = por %p55, %p56
      %p58 = scmp.ne.s32.totalorder %s50, %s53
      %p59 = scmp.eq.s32.totalorder %s26, 0
      %p60 = por %p58, %p59
      %p61 = scmp.ne.s32.totalorder %s50, %s53
      %p62 = scmp.eq.s32.totalorder %s31, 1
      %p63 = por %p61, %p62
      %p64 = scmp.ne.s32.totalorder %s53, %s54
      %p65 = scmp.eq.s32.totalorder %s31, 0
      %p66 = por %p64, %p65
      %p67 = scmp.ne.s32.totalorder %s53, %s54
      %p68 = scmp.eq.s32.totalorder %s32, 1
      %p69 = por %p67, %p68
      %p71 = scmp.ne.s32.totalorder %s54, %s70
      %p72 = scmp.eq.s32.totalorder %s32, 0
      %p73 = por %p71, %p72
      %s74 = ssub.s32 %s33, %s45
      %p75 = scmp.eq.s32.totalorder %s74, 0
      %s77 = sadd.s32 %s76, 1
      %s78 = scalar_select %p75, %s76, %s77
      %p81 = pneg %p75
      %p82 = scmp.eq.s32.totalorder %s26, 1
      %p83 = por %p81, %p82
      %p84 = scmp.ne.s32.totalorder %s76, %s79
      %p85 = scmp.eq.s32.totalorder %s26, 0
      %p86 = por %p84, %p85
      %p87 = scmp.ne.s32.totalorder %s76, %s79
      %p88 = scmp.eq.s32.totalorder %s31, 1
      %p89 = por %p87, %p88
      %p90 = scmp.ne.s32.totalorder %s79, %s80
      %p91 = scmp.eq.s32.totalorder %s31, 0
      %p92 = por %p90, %p91
      %p93 = scmp.ne.s32.totalorder %s79, %s80
      %p94 = scmp.eq.s32.totalorder %s32, 1
      %p95 = por %p93, %p94
      %p97 = scmp.ne.s32.totalorder %s80, %s96
      %p98 = scmp.eq.s32.totalorder %s32, 0
      %p99 = por %p97, %p98
      %s101 = sadd.s32 %s100, 1
      %p104 = scmp.eq.s32.totalorder %s26, 1
      %p105 = scmp.ne.s32.totalorder %s100, %s102
      %p106 = scmp.eq.s32.totalorder %s26, 0
      %p107 = por %p105, %p106
      %p108 = scmp.ne.s32.totalorder %s100, %s102
      %p109 = scmp.eq.s32.totalorder %s31, 1
      %p110 = por %p108, %p109
      %p111 = scmp.ne.s32.totalorder %s102, %s103
      %p112 = scmp.eq.s32.totalorder %s31, 0
      %p113 = por %p111, %p112
      %p114 = scmp.ne.s32.totalorder %s102, %s103
      %p115 = scmp.eq.s32.totalorder %s32, 1
      %p116 = por %p114, %p115
      %p118 = scmp.ne.s32.totalorder %s103, %s117
      %p119 = scmp.eq.s32.totalorder %s32, 0
      %p120 = por %p118, %p119
      %s122 = sadd.s32 %s121, 1
      %p125 = scmp.eq.s32.totalorder %s26, 1
      %p126 = scmp.ne.s32.totalorder %s121, %s123
      %p127 = scmp.eq.s32.totalorder %s26, 0
      %p128 = por %p126, %p127
      %p129 = scmp.ne.s32.totalorder %s121, %s123
      %p130 = scmp.eq.s32.totalorder %s31, 1
      %p131 = por %p129, %p130
      %p132 = scmp.ne.s32.totalorder %s123, %s124
      %p133 = scmp.eq.s32.totalorder %s31, 0
      %p134 = por %p132, %p133
      %p135 = scmp.ne.s32.totalorder %s123, %s124
      %p136 = scmp.eq.s32.totalorder %s32, 1
      %p137 = por %p135, %p136
      %p139 = scmp.ne.s32.totalorder %s124, %s138
      %p140 = scmp.eq.s32.totalorder %s32, 0
      %p141 = por %p139, %p140
      %s143 = sadd.s32 %s142, 1
      %p146 = scmp.eq.s32.totalorder %s26, 1
      %p147 = scmp.ne.s32.totalorder %s142, %s144
      %p148 = scmp.eq.s32.totalorder %s26, 0
      %p149 = por %p147, %p148
      %p150 = scmp.ne.s32.totalorder %s142, %s144
      %p151 = scmp.eq.s32.totalorder %s31, 1
      %p152 = por %p150, %p151
      %p153 = scmp.ne.s32.totalorder %s144, %s145
      %p154 = scmp.eq.s32.totalorder %s31, 0
      %p155 = por %p153, %p154
      %p156 = scmp.ne.s32.totalorder %s144, %s145
      %p157 = scmp.eq.s32.totalorder %s32, 1
      %p158 = por %p156, %p157
      %p160 = scmp.ne.s32.totalorder %s145, %s159
      %p161 = scmp.eq.s32.totalorder %s32, 0
      %p162 = por %p160, %p161
      %s164 = sadd.s32 %s163, 1
      %p167 = scmp.eq.s32.totalorder %s26, 1
      %p168 = scmp.ne.s32.totalorder %s163, %s165
      %p169 = scmp.eq.s32.totalorder %s26, 0
      %p170 = por %p168, %p169
      %p171 = scmp.ne.s32.totalorder %s163, %s165
      %p172 = scmp.eq.s32.totalorder %s31, 1
      %p173 = por %p171, %p172
      %p174 = scmp.ne.s32.totalorder %s165, %s166
      %p175 = scmp.eq.s32.totalorder %s31, 0
      %p176 = por %p174, %p175
      %p177 = scmp.ne.s32.totalorder %s165, %s166
      %p178 = scmp.eq.s32.totalorder %s32, 1
      %p179 = por %p177, %p178
      %p181 = scmp.ne.s32.totalorder %s166, %s180
      %p182 = scmp.eq.s32.totalorder %s32, 0
      %p183 = por %p181, %p182
      %s185 = sadd.s32 %s184, 1
      %p188 = scmp.eq.s32.totalorder %s26, 1
      %p189 = scmp.ne.s32.totalorder %s184, %s186
      %p190 = scmp.eq.s32.totalorder %s26, 0
      %p191 = por %p189, %p190
      %p192 = scmp.ne.s32.totalorder %s184, %s186
      %p193 = scmp.eq.s32.totalorder %s31, 1
      %p194 = por %p192, %p193
      %p195 = scmp.ne.s32.totalorder %s186, %s187
      %p196 = scmp.eq.s32.totalorder %s31, 0
      %p197 = por %p195, %p196
      %p198 = scmp.ne.s32.totalorder %s186, %s187
      %p199 = scmp.eq.s32.totalorder %s32, 1
      %p200 = por %p198, %p199
      %p202 = scmp.ne.s32.totalorder %s187, %s201
      %p203 = scmp.eq.s32.totalorder %s32, 0
      %p204 = por %p202, %p203
      %s206 = sadd.s32 %s205, 1
      %p209 = scmp.eq.s32.totalorder %s26, 1
      %p210 = scmp.ne.s32.totalorder %s205, %s207
      %p211 = scmp.eq.s32.totalorder %s26, 0
      %p212 = por %p210, %p211
      %p213 = scmp.ne.s32.totalorder %s205, %s207
      %p214 = scmp.eq.s32.totalorder %s31, 1
      %p215 = por %p213, %p214
      %p216 = scmp.ne.s32.totalorder %s207, %s208
      %p217 = scmp.eq.s32.totalorder %s31, 0
      %p218 = por %p216, %p217
      %p219 = scmp.ne.s32.totalorder %s207, %s208
      %p220 = scmp.eq.s32.totalorder %s32, 1
      %p221 = por %p219, %p220
      %p223 = scmp.ne.s32.totalorder %s208, %s222
      %p224 = scmp.eq.s32.totalorder %s32, 0
      %p225 = por %p223, %p224
      %s226 = ssub.s32 %s33, %s45
      %s227 = ssub.s32 %s34, %s41
      %s228 = sor.u32 %s226, %s227
      %p229 = scmp.eq.s32.totalorder %s228, 0
      %s231 = sadd.s32 %s230, 1
      %s232 = scalar_select %p229, %s230, %s231
      %p235 = pneg %p229
      %p236 = scmp.eq.s32.totalorder %s26, 1
      %p237 = por %p235, %p236
      %p238 = scmp.ne.s32.totalorder %s230, %s233
      %p239 = scmp.eq.s32.totalorder %s26, 0
      %p240 = por %p238, %p239
      %p241 = scmp.ne.s32.totalorder %s230, %s233
      %p242 = scmp.eq.s32.totalorder %s31, 1
      %p243 = por %p241, %p242
      %p244 = scmp.ne.s32.totalorder %s233, %s234
      %p245 = scmp.eq.s32.totalorder %s31, 0
      %p246 = por %p244, %p245
      %p247 = scmp.ne.s32.totalorder %s233, %s234
      %p248 = scmp.eq.s32.totalorder %s32, 1
      %p249 = por %p247, %p248
      %p251 = scmp.ne.s32.totalorder %s234, %s250
      %p252 = scmp.eq.s32.totalorder %s32, 0
      %p253 = por %p251, %p252
      %p254 = scmp.le.s32.totalorder 1, %s26
      %p255 = scmp.lt.s32.totalorder %s26, 3
      %p256 = pnand %p254, %p255
      %p257 = pneg %p256
      // Predicated region
      $region9: #{tpu_custom_call.1} parent=5 // pred_check
        _
      $region10: #{tpu_custom_call.1} parent=5 // pred_check_branch
        %259 = sbr.rel (%p256) target = $region12
      $region11: #{tpu_custom_call.1} parent=5 // pred_region
        %s260 = ssub.s32 %s26, 1
        // Predicated region
        $region13: #{tpu_custom_call.1} parent=11 // pred_check
          %p261 = pneg %p113
        $region14: #{tpu_custom_call.1} parent=11 // pred_check_branch
          %263 = sbr.rel (%p261) target = $region16
        $region15: #{tpu_custom_call.1} parent=11 // pred_region
          %s265 = ssub.s32 512, 512
          %266 = vsyncadd [#allocation7], %s265
          %s267 = sshll.u32 [#allocation8], 4
          %s268 = int_to_ptr.vmem [resolvable:$true] %s267
          %273 = dma.hbm_to_vmem [thread:$0]  %s2, 512, %s268, [#allocation7], 128, 128, 8
        $region16: #{tpu_custom_call.1} parent=11 // pred_fallthru
          _
        // Predicated region
        $region17: #{tpu_custom_call.1} parent=11 // pred_check
          %p274 = pneg %p134
        $region18: #{tpu_custom_call.1} parent=11 // pred_check_branch
          %276 = sbr.rel (%p274) target = $region20
        $region19: #{tpu_custom_call.1} parent=11 // pred_region
          %s278 = ssub.s32 16, 16
          %279 = vsyncadd [#allocation10], %s278
          %s281 = sshll.u32 [#allocation9], 4
          %s282 = int_to_ptr.vmem [resolvable:$true] %s281
          %284 = dma.hbm_to_vmem [thread:$0]  %s3, 16, %s282, [#allocation10]
        $region20: #{tpu_custom_call.1} parent=11 // pred_fallthru
          _
        // Predicated region
        $region21: #{tpu_custom_call.1} parent=11 // pred_check
          %p285 = pneg %p155
        $region22: #{tpu_custom_call.1} parent=11 // pred_check_branch
          %287 = sbr.rel (%p285) target = $region24
        $region23: #{tpu_custom_call.1} parent=11 // pred_region
          %s289 = ssub.s32 512, 512
          %290 = vsyncadd [#allocation10], %s289
          %s291 = sshll.u32 [#allocation11], 4
          %s292 = int_to_ptr.vmem [resolvable:$true] %s291
          %297 = dma.hbm_to_vmem [thread:$0]  %s4, 512, %s292, [#allocation10], 128, 128, 8
        $region24: #{tpu_custom_call.1} parent=11 // pred_fallthru
          _
        // Predicated region
        $region25: #{tpu_custom_call.1} parent=11 // pred_check
          %p298 = pneg %p176
        $region26: #{tpu_custom_call.1} parent=11 // pred_check_branch
          %300 = sbr.rel (%p298) target = $region28
        $region27: #{tpu_custom_call.1} parent=11 // pred_region
          %s302 = ssub.s32 16, 16
          %303 = vsyncadd [#allocation13], %s302
          %s305 = sshll.u32 [#allocation12], 4
          %s306 = int_to_ptr.vmem [resolvable:$true] %s305
          %308 = dma.hbm_to_vmem [thread:$0]  %s5, 16, %s306, [#allocation13]
        $region28: #{tpu_custom_call.1} parent=11 // pred_fallthru
          _
        // Predicated region
        $region29: #{tpu_custom_call.1} parent=11 // pred_check
          %p309 = pneg %p197
        $region30: #{tpu_custom_call.1} parent=11 // pred_check_branch
          %311 = sbr.rel (%p309) target = $region32
        $region31: #{tpu_custom_call.1} parent=11 // pred_region
          %s313 = ssub.s32 1024, 1024
          %314 = vsyncadd [#allocation13], %s313
          %s315 = sshll.u32 [#allocation14], 4
          %s316 = int_to_ptr.vmem [resolvable:$true] %s315
          %321 = dma.hbm_to_vmem [thread:$0]  %s6, 1024, %s316, [#allocation13], 128, 128, 8
        $region32: #{tpu_custom_call.1} parent=11 // pred_fallthru
          _
        // Predicated region
        $region33: #{tpu_custom_call.1} parent=11 // pred_check
          %p322 = pneg %p218
        $region34: #{tpu_custom_call.1} parent=11 // pred_check_branch
          %324 = sbr.rel (%p322) target = $region36
        $region35: #{tpu_custom_call.1} parent=11 // pred_region
          %s326 = ssub.s32 16, 16
          %327 = vsyncadd [#allocation16], %s326
          %s329 = sshll.u32 [#allocation15], 4
          %s330 = int_to_ptr.vmem [resolvable:$true] %s329
          %332 = dma.hbm_to_vmem [thread:$0]  %s7, 16, %s330, [#allocation16]
        $region36: #{tpu_custom_call.1} parent=11 // pred_fallthru
          _
      $region12: #{tpu_custom_call.1} parent=5 // pred_fallthru
        _
      %p333 = scmp.lt.s32.totalorder %s26, 2
      // Predicated region
      $region37: #{tpu_custom_call.1} parent=5 // pred_check
        %p334 = pneg %p333
      $region38: #{tpu_custom_call.1} parent=5 // pred_check_branch
        %336 = sbr.rel (%p334) target = $region40
      $region39: #{tpu_custom_call.1} parent=5 // pred_region
        // Predicated region
        $region41: #{tpu_custom_call.1} parent=39 // pred_check
          %p337 = pneg %p60
        $region42: #{tpu_custom_call.1} parent=39 // pred_check_branch
          %339 = sbr.rel (%p337) target = $region44
        $region43: #{tpu_custom_call.1} parent=39 // pred_region
          %s340 = sand.u32 %s50, 1
          %s341 = scalar_lea.sflag [#allocation4], %s340
          %s342 = sand.u32 %s50, 1
          %s343 = smul.addr %s342, 8
          %s344 = scalar_lea.vmem [#allocation3], %s343
          %s346 = ssub.s32 128, 128
          %347 = vsyncadd %s341, %s346
          %s348 = sadd.s32 %s34, %s33
          %s349 = smul.addr %s348, 128
          %s350 = scalar_lea.hbm %s0, %s349
          %s352 = sshll.u32 %s344, 4
          %s353 = int_to_ptr.vmem [resolvable:$true] %s352
          %355 = dma.hbm_to_vmem [thread:$0]  %s350, 128, %s353, %s341
        $region44: #{tpu_custom_call.1} parent=39 // pred_fallthru
          _
        // Predicated region
        $region45: #{tpu_custom_call.1} parent=39 // pred_check
          %p356 = pneg %p86
        $region46: #{tpu_custom_call.1} parent=39 // pred_check_branch
          %358 = sbr.rel (%p356) target = $region48
        $region47: #{tpu_custom_call.1} parent=39 // pred_region
          %s359 = sand.u32 %s26, 1
          %s360 = scalar_lea.sflag [#allocation7], %s359
          %s361 = sand.u32 %s76, 1
          %s362 = smul.addr %s361, 8
          %s363 = scalar_lea.vmem [#allocation6], %s362
          %s365 = ssub.s32 128, 128
          %366 = vsyncadd %s360, %s365
          %s367 = smul.addr %s33, 128
          %s368 = scalar_lea.hbm %s1, %s367
          %s370 = sshll.u32 %s363, 4
          %s371 = int_to_ptr.vmem [resolvable:$true] %s370
          %373 = dma.hbm_to_vmem [thread:$0]  %s368, 128, %s371, %s360
        $region48: #{tpu_custom_call.1} parent=39 // pred_fallthru
          _
      $region40: #{tpu_custom_call.1} parent=5 // pred_fallthru
        _
      %p374 = scmp.le.s32.totalorder 1, %s26
      %p375 = scmp.lt.s32.totalorder %s26, 3
      %p376 = pnand %p374, %p375
      %p377 = pneg %p376
      // Predicated region
      $region49: #{tpu_custom_call.1} parent=5 // pred_check
        _
      $region50: #{tpu_custom_call.1} parent=5 // pred_check_branch
        %379 = sbr.rel (%p376) target = $region52
      $region51: #{tpu_custom_call.1} parent=5 // pred_region
        %s380 = ssub.s32 %s26, 1
        %s381 = sand.u32 %s53, 1
        %s382 = scalar_lea.sflag [#allocation4], %s381
        %s383 = sand.u32 %s53, 1
        %s384 = smul.addr %s383, 8
        %s385 = scalar_lea.vmem [#allocation3], %s384
        // Predicated region
        $region53: #{tpu_custom_call.1} parent=51 // pred_check
          %p386 = pneg %p66
        $region54: #{tpu_custom_call.1} parent=51 // pred_check_branch
          %388 = sbr.rel (%p386) target = $region56
        $region55: #{tpu_custom_call.1} parent=51 // pred_region
          %389 = dma.done %s382, 128
        $region56: #{tpu_custom_call.1} parent=51 // pred_fallthru
          _
        %s390 = sand.u32 %s31, 1
        %s391 = scalar_lea.sflag [#allocation7], %s390
        %s392 = sand.u32 %s79, 1
        %s393 = smul.addr %s392, 8
        %s394 = scalar_lea.vmem [#allocation6], %s393
        // Predicated region
        $region57: #{tpu_custom_call.1} parent=51 // pred_check
          %p395 = pneg %p92
        $region58: #{tpu_custom_call.1} parent=51 // pred_check_branch
          %397 = sbr.rel (%p395) target = $region60
        $region59: #{tpu_custom_call.1} parent=51 // pred_region
          %398 = dma.done %s391, 128
        $region60: #{tpu_custom_call.1} parent=51 // pred_fallthru
          _
        // Predicated region
        $region61: #{tpu_custom_call.1} parent=51 // pred_check
          %p399 = pneg %p113
        $region62: #{tpu_custom_call.1} parent=51 // pred_check_branch
          %401 = sbr.rel (%p399) target = $region64
        $region63: #{tpu_custom_call.1} parent=51 // pred_region
          %402 = dma.done [#allocation7], 512
        $region64: #{tpu_custom_call.1} parent=51 // pred_fallthru
          _
        // Predicated region
        $region65: #{tpu_custom_call.1} parent=51 // pred_check
          %p403 = pneg %p134
        $region66: #{tpu_custom_call.1} parent=51 // pred_check_branch
          %405 = sbr.rel (%p403) target = $region68
        $region67: #{tpu_custom_call.1} parent=51 // pred_region
          %406 = dma.done [#allocation10], 16
        $region68: #{tpu_custom_call.1} parent=51 // pred_fallthru
          _
        // Predicated region
        $region69: #{tpu_custom_call.1} parent=51 // pred_check
          %p407 = pneg %p155
        $region70: #{tpu_custom_call.1} parent=51 // pred_check_branch
          %409 = sbr.rel (%p407) target = $region72
        $region71: #{tpu_custom_call.1} parent=51 // pred_region
          %410 = dma.done [#allocation10], 512
        $region72: #{tpu_custom_call.1} parent=51 // pred_fallthru
          _
        // Predicated region
        $region73: #{tpu_custom_call.1} parent=51 // pred_check
          %p411 = pneg %p176
        $region74: #{tpu_custom_call.1} parent=51 // pred_check_branch
          %413 = sbr.rel (%p411) target = $region76
        $region75: #{tpu_custom_call.1} parent=51 // pred_region
          %414 = dma.done [#allocation13], 16
        $region76: #{tpu_custom_call.1} parent=51 // pred_fallthru
          _
        // Predicated region
        $region77: #{tpu_custom_call.1} parent=51 // pred_check
          %p415 = pneg %p197
        $region78: #{tpu_custom_call.1} parent=51 // pred_check_branch
          %417 = sbr.rel (%p415) target = $region80
        $region79: #{tpu_custom_call.1} parent=51 // pred_region
          %418 = dma.done [#allocation13], 1024
        $region80: #{tpu_custom_call.1} parent=51 // pred_fallthru
          _
        // Predicated region
        $region81: #{tpu_custom_call.1} parent=51 // pred_check
          %p419 = pneg %p218
        $region82: #{tpu_custom_call.1} parent=51 // pred_check_branch
          %421 = sbr.rel (%p419) target = $region84
        $region83: #{tpu_custom_call.1} parent=51 // pred_region
          %422 = dma.done [#allocation16], 16
        $region84: #{tpu_custom_call.1} parent=51 // pred_fallthru
          _
        %s423 = sand.u32 %s53, 1
        %s424 = scalar_lea.sflag [#allocation4], %s423
        %s425 = sand.u32 %s53, 1
        %s426 = smul.addr %s425, 8
        %s427 = scalar_lea.vmem [#allocation3], %s426
        %p428 = pneg %p66
        %p429 = pneg %p63
        %s430 = sand.u32 %s31, 1
        %s431 = scalar_lea.sflag [#allocation7], %s430
        %s432 = sand.u32 %s79, 1
        %s433 = smul.addr %s432, 8
        %s434 = scalar_lea.vmem [#allocation6], %s433
        %p435 = pneg %p92
        %p436 = pneg %p89
        %p437 = pneg %p113
        %p438 = pneg %p110
        %p439 = pneg %p134
        %p440 = pneg %p131
        %p441 = pneg %p155
        %p442 = pneg %p152
        %p443 = pneg %p176
        %p444 = pneg %p173
        %p445 = pneg %p197
        %p446 = pneg %p194
        %p447 = pneg %p218
        %p448 = pneg %p215
        %p449 = pneg %p246
        %p450 = pneg %p243
        %s451 = sand.u32 %s233, 1
        %s452 = scalar_lea.sflag [#allocation5], %s451
        %s453 = sand.u32 %s233, 1
        %s454 = smul.addr %s453, 8
        %s455 = scalar_lea.vmem [#allocation17], %s454
        %p456 = scmp.eq.s32.totalorder %s36, 0
        // Predicated region
        $region85: #{tpu_custom_call.1} parent=51 // pred_check
          %p457 = pneg %p456
        $region86: #{tpu_custom_call.1} parent=51 // pred_check_branch
          %459 = sbr.rel (%p457) target = $region88
        $region87: #{tpu_custom_call.1} parent=51 // pred_region
          %v460 = vld [vmem:[%s394] sm:$0xff]
          %v461 = vld [vmem:[#allocation11] sm:$0xff]
          %v462 = vld [vmem:[#allocation11 + $0x8] sm:$0xff]
          %v463 = vld [vmem:[#allocation11 + $0x10] sm:$0xff]
          %v464 = vld [vmem:[#allocation11 + $0x18] sm:$0xff]
          %v465 = vld [vmem:[#allocation12] sm:$0x1]
          %v467 = vlaneseq
          %v468 = vshrl.u32 %v467, 7
          %v469 = vsub.s32 0, %v468
          %v470 = vrot.slane %v465, %v469
          %vm472 = vcmask 261120
          %v474 = vsel %vm472, %v460, 0
          %476 = vmatprep.subr.mxu0 0.0
          %477 = vmatpush1.msra.mxu0 %v461
          %478 = vmatprep.subr.mxu0 0.0
          %479 = vmatpush1.msra.mxu0 %v462
          %480 = vmatprep.subr.mxu0 0.0
          %481 = vmatpush1.msra.mxu0 %v463
          %482 = vmatprep.subr.mxu0 0.0
          %483 = vmatpush1.msra.mxu0 %v464
          %484 = vmatprep.subr.mxu0 0.0
          %485 = vmatpush1.msra.mxu0 0.0
          %486 = vmatprep.subr.mxu0 0.0
          %487 = vmatpush1.msra.mxu0 0.0
          %488 = vmatprep.subr.mxu0 0.0
          %489 = vmatpush1.msra.mxu0 0.0
          %490 = vmatprep.subr.mxu0 0.0
          %491 = vmatpush1.msra.mxu0 0.0
          %492 = vmatprep.subr.mxu0 0.0
          %493 = vmatpush1.msra.mxu0 0.0
          %494 = vmatprep.subr.mxu0 0.0
          %495 = vmatpush1.msra.mxu0 0.0
          %496 = vmatprep.subr.mxu0 0.0
          %497 = vmatpush1.msra.mxu0 0.0
          %498 = vmatprep.subr.mxu0 0.0
          %499 = vmatpush1.msra.mxu0 0.0
          %500 = vmatprep.subr.mxu0 0.0
          %501 = vmatpush1.msra.mxu0 0.0
          %502 = vmatprep.subr.mxu0 0.0
          %503 = vmatpush1.msra.mxu0 0.0
          %504 = vmatprep.subr.mxu0 0.0
          %505 = vmatpush1.msra.mxu0 0.0
          %506 = vmatprep.subr.mxu0 0.0
          %507 = vmatpush1.msra.mxu0 0.0
          %508 = vmatprep.subr.mxu0 0.0
          %509 = vmatpush1.msra.mxu0 0.0
          %510 = vmatprep.subr.mxu0 0.0
          %511 = vmatpush1.msra.mxu0 0.0
          %512 = vmatprep.subr.mxu0 0.0
          %513 = vmatpush1.msra.mxu0 0.0
          %514 = vmatprep.subr.mxu0 0.0
          %515 = vmatpush1.msra.mxu0 0.0
          %516 = vmatprep.subr.mxu0 0.0
          %517 = vmatpush1.msra.mxu0 0.0
          %518 = vmatprep.subr.mxu0 0.0
          %519 = vmatpush1.msra.mxu0 0.0
          %520 = vmatprep.subr.mxu0 0.0
          %521 = vmatpush1.msra.mxu0 0.0
          %522 = vmatprep.subr.mxu0 0.0
          %523 = vmatpush1.msra.mxu0 0.0
          %524 = vmatprep.subr.mxu0 0.0
          %525 = vmatpush1.msra.mxu0 0.0
          %526 = vmatprep.subr.mxu0 0.0
          %527 = vmatpush1.msra.mxu0 0.0
          %528 = vmatprep.subr.mxu0 0.0
          %529 = vmatpush1.msra.mxu0 0.0
          %530 = vmatprep.subr.mxu0 0.0
          %531 = vmatpush1.msra.mxu0 0.0
          %532 = vmatprep.subr.mxu0 0.0
          %533 = vmatpush1.msra.mxu0 0.0
          %534 = vmatprep.subr.mxu0 0.0
          %535 = vmatpush1.msra.mxu0 0.0
          %536 = vmatprep.subr.mxu0 0.0
          %537 = vmatpush1.msra.mxu0 0.0
          %538 = vmatprep.subr.mxu0 0.0
          %539 = vmatpush1.msra.mxu0 0.0
          %540 = vmatprep.mubr.f32.mxu0 0.0
          %541 = vmatmul.mubr.f32.gmra.mrb[0].mxu0 %v474
          %v542 = vpop.f32.mrb[0].mxu0
          %v543 = vadd.f32 %v470, %v542
          %v544 = vpop.f32.mrb[0].mxu0
          %545 = vdwg.mxu0
          %546 = vst [vmem:[#allocation2] sm:$0xff] %v543
        $region88: #{tpu_custom_call.1} parent=51 // pred_fallthru
          _
        %v547 = vld [vmem:[%s385] sm:$0xff]
        %v548 = vld [vmem:[#allocation8] sm:$0xff]
        %v549 = vld [vmem:[#allocation8 + $0x8] sm:$0xff]
        %v550 = vld [vmem:[#allocation8 + $0x10] sm:$0xff]
        %v551 = vld [vmem:[#allocation8 + $0x18] sm:$0xff]
        %v552 = vld [vmem:[#allocation9] sm:$0x1]
        %v554 = vlaneseq
        %v555 = vshrl.u32 %v554, 7
        %v556 = vsub.s32 0, %v555
        %v557 = vrot.slane %v552, %v556
        %vm559 = vcmask 261120
        %v561 = vsel %vm559, %v547, 0
        %563 = vmatprep.subr.mxu0 0.0
        %564 = vmatpush1.msra.mxu0 %v548
        %565 = vmatprep.subr.mxu0 0.0
        %566 = vmatpush1.msra.mxu0 %v549
        %567 = vmatprep.subr.mxu0 0.0
        %568 = vmatpush1.msra.mxu0 %v550
        %569 = vmatprep.subr.mxu0 0.0
        %570 = vmatpush1.msra.mxu0 %v551
        %571 = vmatprep.subr.mxu0 0.0
        %572 = vmatpush1.msra.mxu0 0.0
        %573 = vmatprep.subr.mxu0 0.0
        %574 = vmatpush1.msra.mxu0 0.0
        %575 = vmatprep.subr.mxu0 0.0
        %576 = vmatpush1.msra.mxu0 0.0
        %577 = vmatprep.subr.mxu0 0.0
        %578 = vmatpush1.msra.mxu0 0.0
        %579 = vmatprep.subr.mxu0 0.0
        %580 = vmatpush1.msra.mxu0 0.0
        %581 = vmatprep.subr.mxu0 0.0
        %582 = vmatpush1.msra.mxu0 0.0
        %583 = vmatprep.subr.mxu0 0.0
        %584 = vmatpush1.msra.mxu0 0.0
        %585 = vmatprep.subr.mxu0 0.0
        %586 = vmatpush1.msra.mxu0 0.0
        %587 = vmatprep.subr.mxu0 0.0
        %588 = vmatpush1.msra.mxu0 0.0
        %589 = vmatprep.subr.mxu0 0.0
        %590 = vmatpush1.msra.mxu0 0.0
        %591 = vmatprep.subr.mxu0 0.0
        %592 = vmatpush1.msra.mxu0 0.0
        %593 = vmatprep.subr.mxu0 0.0
        %594 = vmatpush1.msra.mxu0 0.0
        %595 = vmatprep.subr.mxu0 0.0
        %596 = vmatpush1.msra.mxu0 0.0
        %597 = vmatprep.subr.mxu0 0.0
        %598 = vmatpush1.msra.mxu0 0.0
        %599 = vmatprep.subr.mxu0 0.0
        %600 = vmatpush1.msra.mxu0 0.0
        %601 = vmatprep.subr.mxu0 0.0
        %602 = vmatpush1.msra.mxu0 0.0
        %603 = vmatprep.subr.mxu0 0.0
        %604 = vmatpush1.msra.mxu0 0.0
        %605 = vmatprep.subr.mxu0 0.0
        %606 = vmatpush1.msra.mxu0 0.0
        %607 = vmatprep.subr.mxu0 0.0
        %608 = vmatpush1.msra.mxu0 0.0
        %609 = vmatprep.subr.mxu0 0.0
        %610 = vmatpush1.msra.mxu0 0.0
        %611 = vmatprep.subr.mxu0 0.0
        %612 = vmatpush1.msra.mxu0 0.0
        %613 = vmatprep.subr.mxu0 0.0
        %614 = vmatpush1.msra.mxu0 0.0
        %615 = vmatprep.subr.mxu0 0.0
        %616 = vmatpush1.msra.mxu0 0.0
        %617 = vmatprep.subr.mxu0 0.0
        %618 = vmatpush1.msra.mxu0 0.0
        %619 = vmatprep.subr.mxu0 0.0
        %620 = vmatpush1.msra.mxu0 0.0
        %621 = vmatprep.subr.mxu0 0.0
        %622 = vmatpush1.msra.mxu0 0.0
        %623 = vmatprep.subr.mxu0 0.0
        %624 = vmatpush1.msra.mxu0 0.0
        %625 = vmatprep.subr.mxu0 0.0
        %626 = vmatpush1.msra.mxu0 0.0
        %627 = vmatprep.mubr.f32.mxu0 0.0
        %628 = vmatmul.mubr.f32.gmra.mrb[0].mxu0 %v561
        %v629 = vpop.f32.mrb[0].mxu0
        %v630 = vadd.f32 %v557, %v629
        %v631 = vpop.f32.mrb[0].mxu0
        %632 = vdwg.mxu0
        %v633 = vld [vmem:[#allocation2] sm:$0xff]
        %s634 = smul.u32 %s36, 8
        %v635 = vlaneseq
        %v636 = vshrl.u32 %v635, 7
        %v637 = vstv %s634
        %v638 = vadd.s32 %v637, %v636
        %v639 = vlaneseq
        %v640 = vand.u32 %v639, 127
        %vm641 = vcmp.gt.s32.totalorder %v640, %v638
        %vm642 = vcmask 130048
        %v644 = vsel %vm642, %v630, 0
        %v647 = vsel %vm642, %v633, 0
        %649 = vmatprep.subr.mxu0 0.0
        %650 = vmatpush1.xpose.msra.mxu0 %v647
        %651 = vmatprep.subr.mxu0 0.0
        %652 = vmatpush1.xpose.msra.mxu0 0.0
        %653 = vmatprep.subr.mxu0 0.0
        %654 = vmatpush1.xpose.msra.mxu0 0.0
        %655 = vmatprep.subr.mxu0 0.0
        %656 = vmatpush1.xpose.msra.mxu0 0.0
        %657 = vmatprep.subr.mxu0 0.0
        %658 = vmatpush1.xpose.msra.mxu0 0.0
        %659 = vmatprep.subr.mxu0 0.0
        %660 = vmatpush1.xpose.msra.mxu0 0.0
        %661 = vmatprep.subr.mxu0 0.0
        %662 = vmatpush1.xpose.msra.mxu0 0.0
        %663 = vmatprep.subr.mxu0 0.0
        %664 = vmatpush1.xpose.msra.mxu0 0.0
        %665 = vmatprep.subr.mxu0 0.0
        %666 = vmatpush1.xpose.msra.mxu0 0.0
        %667 = vmatprep.subr.mxu0 0.0
        %668 = vmatpush1.xpose.msra.mxu0 0.0
        %669 = vmatprep.subr.mxu0 0.0
        %670 = vmatpush1.xpose.msra.mxu0 0.0
        %671 = vmatprep.subr.mxu0 0.0
        %672 = vmatpush1.xpose.msra.mxu0 0.0
        %673 = vmatprep.subr.mxu0 0.0
        %674 = vmatpush1.xpose.msra.mxu0 0.0
        %675 = vmatprep.subr.mxu0 0.0
        %676 = vmatpush1.xpose.msra.mxu0 0.0
        %677 = vmatprep.subr.mxu0 0.0
        %678 = vmatpush1.xpose.msra.mxu0 0.0
        %679 = vmatprep.subr.mxu0 0.0
        %680 = vmatpush1.xpose.msra.mxu0 0.0
        %681 = vmatprep.subr.mxu0 0.0
        %682 = vmatpush1.xpose.msra.mxu0 0.0
        %683 = vmatprep.subr.mxu0 0.0
        %684 = vmatpush1.xpose.msra.mxu0 0.0
        %685 = vmatprep.subr.mxu0 0.0
        %686 = vmatpush1.xpose.msra.mxu0 0.0
        %687 = vmatprep.subr.mxu0 0.0
        %688 = vmatpush1.xpose.msra.mxu0 0.0
        %689 = vmatprep.subr.mxu0 0.0
        %690 = vmatpush1.xpose.msra.mxu0 0.0
        %691 = vmatprep.subr.mxu0 0.0
        %692 = vmatpush1.xpose.msra.mxu0 0.0
        %693 = vmatprep.subr.mxu0 0.0
        %694 = vmatpush1.xpose.msra.mxu0 0.0
        %695 = vmatprep.subr.mxu0 0.0
        %696 = vmatpush1.xpose.msra.mxu0 0.0
        %697 = vmatprep.subr.mxu0 0.0
        %698 = vmatpush1.xpose.msra.mxu0 0.0
        %699 = vmatprep.subr.mxu0 0.0
        %700 = vmatpush1.xpose.msra.mxu0 0.0
        %701 = vmatprep.subr.mxu0 0.0
        %702 = vmatpush1.xpose.msra.mxu0 0.0
        %703 = vmatprep.subr.mxu0 0.0
        %704 = vmatpush1.xpose.msra.mxu0 0.0
        %705 = vmatprep.subr.mxu0 0.0
        %706 = vmatpush1.xpose.msra.mxu0 0.0
        %707 = vmatprep.subr.mxu0 0.0
        %708 = vmatpush1.xpose.msra.mxu0 0.0
        %709 = vmatprep.subr.mxu0 0.0
        %710 = vmatpush1.xpose.msra.mxu0 0.0
        %711 = vmatprep.subr.mxu0 0.0
        %712 = vmatpush1.xpose.msra.mxu0 0.0
        %713 = vmatprep.mubr.f32.mxu0 0.0
        %714 = vmatmul.mubr.f32.gmra.mrb[0].mxu0 %v644
        %v715 = vpop.f32.mrb[0].mxu0
        %v716 = vadd.f32 0.0, %v715
        %v717 = vpop.f32.mrb[0].mxu0
        %718 = vdwg.mxu0
        %v719 = vmul.f32 %v716, 0.25
        %v720 = vsel %vm641, -100000.0, %v719
        %vm721 = vcmask 64512
        %v722 = vsel %vm721, %v720, -inf
        %723 = vmax.xlane.f32.xlu0 %v722
        %v724 = vpop.xlane.xlu0 %723
        %v725 = vsub.f32 %v720, %v724
        %v726 = vmul.f32 %v725, 1.442695
        %v727 = vpow.pop %v726
        %v728 = vsel %vm721, %v727, 0.0
        %729 = vadd.xlane.f32.xlu0 %v728
        %v730 = vpop.xlane.xlu0 %729
        %v731 = vrcp.pop %v730
        %v732 = vmul.f32 %v727, %v731
        %733 = vrot.lane.b32.xlu0 %v633, 64
        %v734 = vpop.permute.xlu0 %733
        %v737 = vsel %vm721, %v732, 0
        %739 = vmatprep.subr.mxu0 0.0
        %740 = vmatpush1.msra.mxu0 %v734
        %741 = vmatprep.subr.mxu0 0.0
        %742 = vmatpush1.msra.mxu0 0.0
        %743 = vmatprep.subr.mxu0 0.0
        %744 = vmatpush1.msra.mxu0 0.0
        %745 = vmatprep.subr.mxu0 0.0
        %746 = vmatpush1.msra.mxu0 0.0
        %747 = vmatprep.subr.mxu0 0.0
        %748 = vmatpush1.msra.mxu0 0.0
        %749 = vmatprep.subr.mxu0 0.0
        %750 = vmatpush1.msra.mxu0 0.0
        %751 = vmatprep.subr.mxu0 0.0
        %752 = vmatpush1.msra.mxu0 0.0
        %753 = vmatprep.subr.mxu0 0.0
        %754 = vmatpush1.msra.mxu0 0.0
        %755 = vmatprep.subr.mxu0 0.0
        %756 = vmatpush1.msra.mxu0 0.0
        %757 = vmatprep.subr.mxu0 0.0
        %758 = vmatpush1.msra.mxu0 0.0
        %759 = vmatprep.subr.mxu0 0.0
        %760 = vmatpush1.msra.mxu0 0.0
        %761 = vmatprep.subr.mxu0 0.0
        %762 = vmatpush1.msra.mxu0 0.0
        %763 = vmatprep.subr.mxu0 0.0
        %764 = vmatpush1.msra.mxu0 0.0
        %765 = vmatprep.subr.mxu0 0.0
        %766 = vmatpush1.msra.mxu0 0.0
        %767 = vmatprep.subr.mxu0 0.0
        %768 = vmatpush1.msra.mxu0 0.0
        %769 = vmatprep.subr.mxu0 0.0
        %770 = vmatpush1.msra.mxu0 0.0
        %771 = vmatprep.subr.mxu0 0.0
        %772 = vmatpush1.msra.mxu0 0.0
        %773 = vmatprep.subr.mxu0 0.0
        %774 = vmatpush1.msra.mxu0 0.0
        %775 = vmatprep.subr.mxu0 0.0
        %776 = vmatpush1.msra.mxu0 0.0
        %777 = vmatprep.subr.mxu0 0.0
        %778 = vmatpush1.msra.mxu0 0.0
        %779 = vmatprep.subr.mxu0 0.0
        %780 = vmatpush1.msra.mxu0 0.0
        %781 = vmatprep.subr.mxu0 0.0
        %782 = vmatpush1.msra.mxu0 0.0
        %783 = vmatprep.subr.mxu0 0.0
        %784 = vmatpush1.msra.mxu0 0.0
        %785 = vmatprep.subr.mxu0 0.0
        %786 = vmatpush1.msra.mxu0 0.0
        %787 = vmatprep.subr.mxu0 0.0
        %788 = vmatpush1.msra.mxu0 0.0
        %789 = vmatprep.subr.mxu0 0.0
        %790 = vmatpush1.msra.mxu0 0.0
        %791 = vmatprep.subr.mxu0 0.0
        %792 = vmatpush1.msra.mxu0 0.0
        %793 = vmatprep.subr.mxu0 0.0
        %794 = vmatpush1.msra.mxu0 0.0
        %795 = vmatprep.subr.mxu0 0.0
        %796 = vmatpush1.msra.mxu0 0.0
        %797 = vmatprep.subr.mxu0 0.0
        %798 = vmatpush1.msra.mxu0 0.0
        %799 = vmatprep.subr.mxu0 0.0
        %800 = vmatpush1.msra.mxu0 0.0
        %801 = vmatprep.subr.mxu0 0.0
        %802 = vmatpush1.msra.mxu0 0.0
        %803 = vmatprep.mubr.f32.mxu0 0.0
        %804 = vmatmul.mubr.f32.gmra.mrb[0].mxu0 %v737
        %v805 = vpop.f32.mrb[0].mxu0
        %v806 = vadd.f32 0.0, %v805
        %v807 = vpop.f32.mrb[0].mxu0
        %808 = vdwg.mxu0
        %809 = vrot.lane.b32.xlu0 %v630, 112
        %v810 = vpop.permute.xlu0 %809
        %811 = vrot.lane.b32.xlu0 %v633, 112
        %v812 = vpop.permute.xlu0 %811
        %v813 = vsel %vm642, %v810, 0
        %v815 = vsel %vm642, %v812, 0
        %817 = vmatprep.subr.mxu0 0.0
        %818 = vmatpush1.xpose.msra.mxu0 %v815
        %819 = vmatprep.subr.mxu0 0.0
        %820 = vmatpush1.xpose.msra.mxu0 0.0
        %821 = vmatprep.subr.mxu0 0.0
        %822 = vmatpush1.xpose.msra.mxu0 0.0
        %823 = vmatprep.subr.mxu0 0.0
        %824 = vmatpush1.xpose.msra.mxu0 0.0
        %825 = vmatprep.subr.mxu0 0.0
        %826 = vmatpush1.xpose.msra.mxu0 0.0
        %827 = vmatprep.subr.mxu0 0.0
        %828 = vmatpush1.xpose.msra.mxu0 0.0
        %829 = vmatprep.subr.mxu0 0.0
        %830 = vmatpush1.xpose.msra.mxu0 0.0
        %831 = vmatprep.subr.mxu0 0.0
        %832 = vmatpush1.xpose.msra.mxu0 0.0
        %833 = vmatprep.subr.mxu0 0.0
        %834 = vmatpush1.xpose.msra.mxu0 0.0
        %835 = vmatprep.subr.mxu0 0.0
        %836 = vmatpush1.xpose.msra.mxu0 0.0
        %837 = vmatprep.subr.mxu0 0.0
        %838 = vmatpush1.xpose.msra.mxu0 0.0
        %839 = vmatprep.subr.mxu0 0.0
        %840 = vmatpush1.xpose.msra.mxu0 0.0
        %841 = vmatprep.subr.mxu0 0.0
        %842 = vmatpush1.xpose.msra.mxu0 0.0
        %843 = vmatprep.subr.mxu0 0.0
        %844 = vmatpush1.xpose.msra.mxu0 0.0
        %845 = vmatprep.subr.mxu0 0.0
        %846 = vmatpush1.xpose.msra.mxu0 0.0
        %847 = vmatprep.subr.mxu0 0.0
        %848 = vmatpush1.xpose.msra.mxu0 0.0
        %849 = vmatprep.subr.mxu0 0.0
        %850 = vmatpush1.xpose.msra.mxu0 0.0
        %851 = vmatprep.subr.mxu0 0.0
        %852 = vmatpush1.xpose.msra.mxu0 0.0
        %853 = vmatprep.subr.mxu0 0.0
        %854 = vmatpush1.xpose.msra.mxu0 0.0
        %855 = vmatprep.subr.mxu0 0.0
        %856 = vmatpush1.xpose.msra.mxu0 0.0
        %857 = vmatprep.subr.mxu0 0.0
        %858 = vmatpush1.xpose.msra.mxu0 0.0
        %859 = vmatprep.subr.mxu0 0.0
        %860 = vmatpush1.xpose.msra.mxu0 0.0
        %861 = vmatprep.subr.mxu0 0.0
        %862 = vmatpush1.xpose.msra.mxu0 0.0
        %863 = vmatprep.subr.mxu0 0.0
        %864 = vmatpush1.xpose.msra.mxu0 0.0
        %865 = vmatprep.subr.mxu0 0.0
        %866 = vmatpush1.xpose.msra.mxu0 0.0
        %867 = vmatprep.subr.mxu0 0.0
        %868 = vmatpush1.xpose.msra.mxu0 0.0
        %869 = vmatprep.subr.mxu0 0.0
        %870 = vmatpush1.xpose.msra.mxu0 0.0
        %871 = vmatprep.subr.mxu0 0.0
        %872 = vmatpush1.xpose.msra.mxu0 0.0
        %873 = vmatprep.subr.mxu0 0.0
        %874 = vmatpush1.xpose.msra.mxu0 0.0
        %875 = vmatprep.subr.mxu0 0.0
        %876 = vmatpush1.xpose.msra.mxu0 0.0
        %877 = vmatprep.subr.mxu0 0.0
        %878 = vmatpush1.xpose.msra.mxu0 0.0
        %879 = vmatprep.subr.mxu0 0.0
        %880 = vmatpush1.xpose.msra.mxu0 0.0
        %881 = vmatprep.mubr.f32.mxu0 0.0
        %882 = vmatmul.mubr.f32.gmra.mrb[0].mxu0 %v813
        %v883 = vpop.f32.mrb[0].mxu0
        %v884 = vadd.f32 0.0, %v883
        %v885 = vpop.f32.mrb[0].mxu0
        %886 = vdwg.mxu0
        %v887 = vmul.f32 %v884, 0.25
        %v888 = vsel %vm641, -100000.0, %v887
        %v889 = vsel %vm721, %v888, -inf
        %890 = vmax.xlane.f32.xlu0 %v889
        %v891 = vpop.xlane.xlu0 %890
        %v892 = vsub.f32 %v888, %v891
        %v893 = vmul.f32 %v892, 1.442695
        %v894 = vpow.pop %v893
        %v895 = vsel %vm721, %v894, 0.0
        %896 = vadd.xlane.f32.xlu0 %v895
        %v897 = vpop.xlane.xlu0 %896
        %v898 = vrcp.pop %v897
        %v899 = vmul.f32 %v894, %v898
        %900 = vrot.lane.b32.xlu0 %v633, 48
        %v901 = vpop.permute.xlu0 %900
        %v904 = vsel %vm721, %v899, 0
        %906 = vmatprep.subr.mxu0 0.0
        %907 = vmatpush1.msra.mxu0 %v901
        %908 = vmatprep.subr.mxu0 0.0
        %909 = vmatpush1.msra.mxu0 0.0
        %910 = vmatprep.subr.mxu0 0.0
        %911 = vmatpush1.msra.mxu0 0.0
        %912 = vmatprep.subr.mxu0 0.0
        %913 = vmatpush1.msra.mxu0 0.0
        %914 = vmatprep.subr.mxu0 0.0
        %915 = vmatpush1.msra.mxu0 0.0
        %916 = vmatprep.subr.mxu0 0.0
        %917 = vmatpush1.msra.mxu0 0.0
        %918 = vmatprep.subr.mxu0 0.0
        %919 = vmatpush1.msra.mxu0 0.0
        %920 = vmatprep.subr.mxu0 0.0
        %921 = vmatpush1.msra.mxu0 0.0
        %922 = vmatprep.subr.mxu0 0.0
        %923 = vmatpush1.msra.mxu0 0.0
        %924 = vmatprep.subr.mxu0 0.0
        %925 = vmatpush1.msra.mxu0 0.0
        %926 = vmatprep.subr.mxu0 0.0
        %927 = vmatpush1.msra.mxu0 0.0
        %928 = vmatprep.subr.mxu0 0.0
        %929 = vmatpush1.msra.mxu0 0.0
        %930 = vmatprep.subr.mxu0 0.0
        %931 = vmatpush1.msra.mxu0 0.0
        %932 = vmatprep.subr.mxu0 0.0
        %933 = vmatpush1.msra.mxu0 0.0
        %934 = vmatprep.subr.mxu0 0.0
        %935 = vmatpush1.msra.mxu0 0.0
        %936 = vmatprep.subr.mxu0 0.0
        %937 = vmatpush1.msra.mxu0 0.0
        %938 = vmatprep.subr.mxu0 0.0
        %939 = vmatpush1.msra.mxu0 0.0
        %940 = vmatprep.subr.mxu0 0.0
        %941 = vmatpush1.msra.mxu0 0.0
        %942 = vmatprep.subr.mxu0 0.0
        %943 = vmatpush1.msra.mxu0 0.0
        %944 = vmatprep.subr.mxu0 0.0
        %945 = vmatpush1.msra.mxu0 0.0
        %946 = vmatprep.subr.mxu0 0.0
        %947 = vmatpush1.msra.mxu0 0.0
        %948 = vmatprep.subr.mxu0 0.0
        %949 = vmatpush1.msra.mxu0 0.0
        %950 = vmatprep.subr.mxu0 0.0
        %951 = vmatpush1.msra.mxu0 0.0
        %952 = vmatprep.subr.mxu0 0.0
        %953 = vmatpush1.msra.mxu0 0.0
        %954 = vmatprep.subr.mxu0 0.0
        %955 = vmatpush1.msra.mxu0 0.0
        %956 = vmatprep.subr.mxu0 0.0
        %957 = vmatpush1.msra.mxu0 0.0
        %958 = vmatprep.subr.mxu0 0.0
        %959 = vmatpush1.msra.mxu0 0.0
        %960 = vmatprep.subr.mxu0 0.0
        %961 = vmatpush1.msra.mxu0 0.0
        %962 = vmatprep.subr.mxu0 0.0
        %963 = vmatpush1.msra.mxu0 0.0
        %964 = vmatprep.subr.mxu0 0.0
        %965 = vmatpush1.msra.mxu0 0.0
        %966 = vmatprep.subr.mxu0 0.0
        %967 = vmatpush1.msra.mxu0 0.0
        %968 = vmatprep.subr.mxu0 0.0
        %969 = vmatpush1.msra.mxu0 0.0
        %970 = vmatprep.mubr.f32.mxu0 0.0
        %971 = vmatmul.mubr.f32.gmra.mrb[0].mxu0 %v904
        %v972 = vpop.f32.mrb[0].mxu0
        %v973 = vadd.f32 0.0, %v972
        %v974 = vpop.f32.mrb[0].mxu0
        %975 = vdwg.mxu0
        %976 = vrot.lane.b32.xlu0 %v630, 96
        %v977 = vpop.permute.xlu0 %976
        %978 = vrot.lane.b32.xlu0 %v633, 96
        %v979 = vpop.permute.xlu0 %978
        %v980 = vsel %vm642, %v977, 0
        %v982 = vsel %vm642, %v979, 0
        %984 = vmatprep.subr.mxu0 0.0
        %985 = vmatpush1.xpose.msra.mxu0 %v982
        %986 = vmatprep.subr.mxu0 0.0
        %987 = vmatpush1.xpose.msra.mxu0 0.0
        %988 = vmatprep.subr.mxu0 0.0
        %989 = vmatpush1.xpose.msra.mxu0 0.0
        %990 = vmatprep.subr.mxu0 0.0
        %991 = vmatpush1.xpose.msra.mxu0 0.0
        %992 = vmatprep.subr.mxu0 0.0
        %993 = vmatpush1.xpose.msra.mxu0 0.0
        %994 = vmatprep.subr.mxu0 0.0
        %995 = vmatpush1.xpose.msra.mxu0 0.0
        %996 = vmatprep.subr.mxu0 0.0
        %997 = vmatpush1.xpose.msra.mxu0 0.0
        %998 = vmatprep.subr.mxu0 0.0
        %999 = vmatpush1.xpose.msra.mxu0 0.0
        %1000 = vmatprep.subr.mxu0 0.0
        %1001 = vmatpush1.xpose.msra.mxu0 0.0
        %1002 = vmatprep.subr.mxu0 0.0
        %1003 = vmatpush1.xpose.msra.mxu0 0.0
        %1004 = vmatprep.subr.mxu0 0.0
        %1005 = vmatpush1.xpose.msra.mxu0 0.0
        %1006 = vmatprep.subr.mxu0 0.0
        %1007 = vmatpush1.xpose.msra.mxu0 0.0
        %1008 = vmatprep.subr.mxu0 0.0
        %1009 = vmatpush1.xpose.msra.mxu0 0.0
        %1010 = vmatprep.subr.mxu0 0.0
        %1011 = vmatpush1.xpose.msra.mxu0 0.0
        %1012 = vmatprep.subr.mxu0 0.0
        %1013 = vmatpush1.xpose.msra.mxu0 0.0
        %1014 = vmatprep.subr.mxu0 0.0
        %1015 = vmatpush1.xpose.msra.mxu0 0.0
        %1016 = vmatprep.subr.mxu0 0.0
        %1017 = vmatpush1.xpose.msra.mxu0 0.0
        %1018 = vmatprep.subr.mxu0 0.0
        %1019 = vmatpush1.xpose.msra.mxu0 0.0
        %1020 = vmatprep.subr.mxu0 0.0
        %1021 = vmatpush1.xpose.msra.mxu0 0.0
        %1022 = vmatprep.subr.mxu0 0.0
        %1023 = vmatpush1.xpose.msra.mxu0 0.0
        %1024 = vmatprep.subr.mxu0 0.0
        %1025 = vmatpush1.xpose.msra.mxu0 0.0
        %1026 = vmatprep.subr.mxu0 0.0
        %1027 = vmatpush1.xpose.msra.mxu0 0.0
        %1028 = vmatprep.subr.mxu0 0.0
        %1029 = vmatpush1.xpose.msra.mxu0 0.0
        %1030 = vmatprep.subr.mxu0 0.0
        %1031 = vmatpush1.xpose.msra.mxu0 0.0
        %1032 = vmatprep.subr.mxu0 0.0
        %1033 = vmatpush1.xpose.msra.mxu0 0.0
        %1034 = vmatprep.subr.mxu0 0.0
        %1035 = vmatpush1.xpose.msra.mxu0 0.0
        %1036 = vmatprep.subr.mxu0 0.0
        %1037 = vmatpush1.xpose.msra.mxu0 0.0
        %1038 = vmatprep.subr.mxu0 0.0
        %1039 = vmatpush1.xpose.msra.mxu0 0.0
        %1040 = vmatprep.subr.mxu0 0.0
        %1041 = vmatpush1.xpose.msra.mxu0 0.0
        %1042 = vmatprep.subr.mxu0 0.0
        %1043 = vmatpush1.xpose.msra.mxu0 0.0
        %1044 = vmatprep.subr.mxu0 0.0
        %1045 = vmatpush1.xpose.msra.mxu0 0.0
        %1046 = vmatprep.subr.mxu0 0.0
        %1047 = vmatpush1.xpose.msra.mxu0 0.0
        %1048 = vmatprep.mubr.f32.mxu0 0.0
        %1049 = vmatmul.mubr.f32.gmra.mrb[0].mxu0 %v980
        %v1050 = vpop.f32.mrb[0].mxu0
        %v1051 = vadd.f32 0.0, %v1050
        %v1052 = vpop.f32.mrb[0].mxu0
        %1053 = vdwg.mxu0
        %v1054 = vmul.f32 %v1051, 0.25
        %v1055 = vsel %vm641, -100000.0, %v1054
        %v1056 = vsel %vm721, %v1055, -inf
        %1057 = vmax.xlane.f32.xlu0 %v1056
        %v1058 = vpop.xlane.xlu0 %1057
        %v1059 = vsub.f32 %v1055, %v1058
        %v1060 = vmul.f32 %v1059, 1.442695
        %v1061 = vpow.pop %v1060
        %v1062 = vsel %vm721, %v1061, 0.0
        %1063 = vadd.xlane.f32.xlu0 %v1062
        %v1064 = vpop.xlane.xlu0 %1063
        %v1065 = vrcp.pop %v1064
        %v1066 = vmul.f32 %v1061, %v1065
        %1067 = vrot.lane.b32.xlu0 %v633, 32
        %v1068 = vpop.permute.xlu0 %1067
        %v1071 = vsel %vm721, %v1066, 0
        %1073 = vmatprep.subr.mxu0 0.0
        %1074 = vmatpush1.msra.mxu0 %v1068
        %1075 = vmatprep.subr.mxu0 0.0
        %1076 = vmatpush1.msra.mxu0 0.0
        %1077 = vmatprep.subr.mxu0 0.0
        %1078 = vmatpush1.msra.mxu0 0.0
        %1079 = vmatprep.subr.mxu0 0.0
        %1080 = vmatpush1.msra.mxu0 0.0
        %1081 = vmatprep.subr.mxu0 0.0
        %1082 = vmatpush1.msra.mxu0 0.0
        %1083 = vmatprep.subr.mxu0 0.0
        %1084 = vmatpush1.msra.mxu0 0.0
        %1085 = vmatprep.subr.mxu0 0.0
        %1086 = vmatpush1.msra.mxu0 0.0
        %1087 = vmatprep.subr.mxu0 0.0
        %1088 = vmatpush1.msra.mxu0 0.0
        %1089 = vmatprep.subr.mxu0 0.0
        %1090 = vmatpush1.msra.mxu0 0.0
        %1091 = vmatprep.subr.mxu0 0.0
        %1092 = vmatpush1.msra.mxu0 0.0
        %1093 = vmatprep.subr.mxu0 0.0
        %1094 = vmatpush1.msra.mxu0 0.0
        %1095 = vmatprep.subr.mxu0 0.0
        %1096 = vmatpush1.msra.mxu0 0.0
        %1097 = vmatprep.subr.mxu0 0.0
        %1098 = vmatpush1.msra.mxu0 0.0
        %1099 = vmatprep.subr.mxu0 0.0
        %1100 = vmatpush1.msra.mxu0 0.0
        %1101 = vmatprep.subr.mxu0 0.0
        %1102 = vmatpush1.msra.mxu0 0.0
        %1103 = vmatprep.subr.mxu0 0.0
        %1104 = vmatpush1.msra.mxu0 0.0
        %1105 = vmatprep.subr.mxu0 0.0
        %1106 = vmatpush1.msra.mxu0 0.0
        %1107 = vmatprep.subr.mxu0 0.0
        %1108 = vmatpush1.msra.mxu0 0.0
        %1109 = vmatprep.subr.mxu0 0.0
        %1110 = vmatpush1.msra.mxu0 0.0
        %1111 = vmatprep.subr.mxu0 0.0
        %1112 = vmatpush1.msra.mxu0 0.0
        %1113 = vmatprep.subr.mxu0 0.0
        %1114 = vmatpush1.msra.mxu0 0.0
        %1115 = vmatprep.subr.mxu0 0.0
        %1116 = vmatpush1.msra.mxu0 0.0
        %1117 = vmatprep.subr.mxu0 0.0
        %1118 = vmatpush1.msra.mxu0 0.0
        %1119 = vmatprep.subr.mxu0 0.0
        %1120 = vmatpush1.msra.mxu0 0.0
        %1121 = vmatprep.subr.mxu0 0.0
        %1122 = vmatpush1.msra.mxu0 0.0
        %1123 = vmatprep.subr.mxu0 0.0
        %1124 = vmatpush1.msra.mxu0 0.0
        %1125 = vmatprep.subr.mxu0 0.0
        %1126 = vmatpush1.msra.mxu0 0.0
        %1127 = vmatprep.subr.mxu0 0.0
        %1128 = vmatpush1.msra.mxu0 0.0
        %1129 = vmatprep.subr.mxu0 0.0
        %1130 = vmatpush1.msra.mxu0 0.0
        %1131 = vmatprep.subr.mxu0 0.0
        %1132 = vmatpush1.msra.mxu0 0.0
        %1133 = vmatprep.subr.mxu0 0.0
        %1134 = vmatpush1.msra.mxu0 0.0
        %1135 = vmatprep.subr.mxu0 0.0
        %1136 = vmatpush1.msra.mxu0 0.0
        %1137 = vmatprep.mubr.f32.mxu0 0.0
        %1138 = vmatmul.mubr.f32.gmra.mrb[0].mxu0 %v1071
        %v1139 = vpop.f32.mrb[0].mxu0
        %v1140 = vadd.f32 0.0, %v1139
        %v1141 = vpop.f32.mrb[0].mxu0
        %1142 = vdwg.mxu0
        %1143 = vrot.lane.b32.xlu0 %v630, 80
        %v1144 = vpop.permute.xlu0 %1143
        %1145 = vrot.lane.b32.xlu0 %v633, 80
        %v1146 = vpop.permute.xlu0 %1145
        %v1147 = vsel %vm642, %v1144, 0
        %v1149 = vsel %vm642, %v1146, 0
        %1151 = vmatprep.subr.mxu0 0.0
        %1152 = vmatpush1.xpose.msra.mxu0 %v1149
        %1153 = vmatprep.subr.mxu0 0.0
        %1154 = vmatpush1.xpose.msra.mxu0 0.0
        %1155 = vmatprep.subr.mxu0 0.0
        %1156 = vmatpush1.xpose.msra.mxu0 0.0
        %1157 = vmatprep.subr.mxu0 0.0
        %1158 = vmatpush1.xpose.msra.mxu0 0.0
        %1159 = vmatprep.subr.mxu0 0.0
        %1160 = vmatpush1.xpose.msra.mxu0 0.0
        %1161 = vmatprep.subr.mxu0 0.0
        %1162 = vmatpush1.xpose.msra.mxu0 0.0
        %1163 = vmatprep.subr.mxu0 0.0
        %1164 = vmatpush1.xpose.msra.mxu0 0.0
        %1165 = vmatprep.subr.mxu0 0.0
        %1166 = vmatpush1.xpose.msra.mxu0 0.0
        %1167 = vmatprep.subr.mxu0 0.0
        %1168 = vmatpush1.xpose.msra.mxu0 0.0
        %1169 = vmatprep.subr.mxu0 0.0
        %1170 = vmatpush1.xpose.msra.mxu0 0.0
        %1171 = vmatprep.subr.mxu0 0.0
        %1172 = vmatpush1.xpose.msra.mxu0 0.0
        %1173 = vmatprep.subr.mxu0 0.0
        %1174 = vmatpush1.xpose.msra.mxu0 0.0
        %1175 = vmatprep.subr.mxu0 0.0
        %1176 = vmatpush1.xpose.msra.mxu0 0.0
        %1177 = vmatprep.subr.mxu0 0.0
        %1178 = vmatpush1.xpose.msra.mxu0 0.0
        %1179 = vmatprep.subr.mxu0 0.0
        %1180 = vmatpush1.xpose.msra.mxu0 0.0
        %1181 = vmatprep.subr.mxu0 0.0
        %1182 = vmatpush1.xpose.msra.mxu0 0.0
        %1183 = vmatprep.subr.mxu0 0.0
        %1184 = vmatpush1.xpose.msra.mxu0 0.0
        %1185 = vmatprep.subr.mxu0 0.0
        %1186 = vmatpush1.xpose.msra.mxu0 0.0
        %1187 = vmatprep.subr.mxu0 0.0
        %1188 = vmatpush1.xpose.msra.mxu0 0.0
        %1189 = vmatprep.subr.mxu0 0.0
        %1190 = vmatpush1.xpose.msra.mxu0 0.0
        %1191 = vmatprep.subr.mxu0 0.0
        %1192 = vmatpush1.xpose.msra.mxu0 0.0
        %1193 = vmatprep.subr.mxu0 0.0
        %1194 = vmatpush1.xpose.msra.mxu0 0.0
        %1195 = vmatprep.subr.mxu0 0.0
        %1196 = vmatpush1.xpose.msra.mxu0 0.0
        %1197 = vmatprep.subr.mxu0 0.0
        %1198 = vmatpush1.xpose.msra.mxu0 0.0
        %1199 = vmatprep.subr.mxu0 0.0
        %1200 = vmatpush1.xpose.msra.mxu0 0.0
        %1201 = vmatprep.subr.mxu0 0.0
        %1202 = vmatpush1.xpose.msra.mxu0 0.0
        %1203 = vmatprep.subr.mxu0 0.0
        %1204 = vmatpush1.xpose.msra.mxu0 0.0
        %1205 = vmatprep.subr.mxu0 0.0
        %1206 = vmatpush1.xpose.msra.mxu0 0.0
        %1207 = vmatprep.subr.mxu0 0.0
        %1208 = vmatpush1.xpose.msra.mxu0 0.0
        %1209 = vmatprep.subr.mxu0 0.0
        %1210 = vmatpush1.xpose.msra.mxu0 0.0
        %1211 = vmatprep.subr.mxu0 0.0
        %1212 = vmatpush1.xpose.msra.mxu0 0.0
        %1213 = vmatprep.subr.mxu0 0.0
        %1214 = vmatpush1.xpose.msra.mxu0 0.0
        %1215 = vmatprep.mubr.f32.mxu0 0.0
        %1216 = vmatmul.mubr.f32.gmra.mrb[0].mxu0 %v1147
        %v1217 = vpop.f32.mrb[0].mxu0
        %v1218 = vadd.f32 0.0, %v1217
        %v1219 = vpop.f32.mrb[0].mxu0
        %1220 = vdwg.mxu0
        %v1221 = vmul.f32 %v1218, 0.25
        %v1222 = vsel %vm641, -100000.0, %v1221
        %v1223 = vsel %vm721, %v1222, -inf
        %1224 = vmax.xlane.f32.xlu0 %v1223
        %v1225 = vpop.xlane.xlu0 %1224
        %v1226 = vsub.f32 %v1222, %v1225
        %v1227 = vmul.f32 %v1226, 1.442695
        %v1228 = vpow.pop %v1227
        %v1229 = vsel %vm721, %v1228, 0.0
        %1230 = vadd.xlane.f32.xlu0 %v1229
        %v1231 = vpop.xlane.xlu0 %1230
        %v1232 = vrcp.pop %v1231
        %v1233 = vmul.f32 %v1228, %v1232
        %1234 = vrot.lane.b32.xlu0 %v633, 16
        %v1235 = vpop.permute.xlu0 %1234
        %v1238 = vsel %vm721, %v1233, 0
        %1240 = vmatprep.subr.mxu0 0.0
        %1241 = vmatpush1.msra.mxu0 %v1235
        %1242 = vmatprep.subr.mxu0 0.0
        %1243 = vmatpush1.msra.mxu0 0.0
        %1244 = vmatprep.subr.mxu0 0.0
        %1245 = vmatpush1.msra.mxu0 0.0
        %1246 = vmatprep.subr.mxu0 0.0
        %1247 = vmatpush1.msra.mxu0 0.0
        %1248 = vmatprep.subr.mxu0 0.0
        %1249 = vmatpush1.msra.mxu0 0.0
        %1250 = vmatprep.subr.mxu0 0.0
        %1251 = vmatpush1.msra.mxu0 0.0
        %1252 = vmatprep.subr.mxu0 0.0
        %1253 = vmatpush1.msra.mxu0 0.0
        %1254 = vmatprep.subr.mxu0 0.0
        %1255 = vmatpush1.msra.mxu0 0.0
        %1256 = vmatprep.subr.mxu0 0.0
        %1257 = vmatpush1.msra.mxu0 0.0
        %1258 = vmatprep.subr.mxu0 0.0
        %1259 = vmatpush1.msra.mxu0 0.0
        %1260 = vmatprep.subr.mxu0 0.0
        %1261 = vmatpush1.msra.mxu0 0.0
        %1262 = vmatprep.subr.mxu0 0.0
        %1263 = vmatpush1.msra.mxu0 0.0
        %1264 = vmatprep.subr.mxu0 0.0
        %1265 = vmatpush1.msra.mxu0 0.0
        %1266 = vmatprep.subr.mxu0 0.0
        %1267 = vmatpush1.msra.mxu0 0.0
        %1268 = vmatprep.subr.mxu0 0.0
        %1269 = vmatpush1.msra.mxu0 0.0
        %1270 = vmatprep.subr.mxu0 0.0
        %1271 = vmatpush1.msra.mxu0 0.0
        %1272 = vmatprep.subr.mxu0 0.0
        %1273 = vmatpush1.msra.mxu0 0.0
        %1274 = vmatprep.subr.mxu0 0.0
        %1275 = vmatpush1.msra.mxu0 0.0
        %1276 = vmatprep.subr.mxu0 0.0
        %1277 = vmatpush1.msra.mxu0 0.0
        %1278 = vmatprep.subr.mxu0 0.0
        %1279 = vmatpush1.msra.mxu0 0.0
        %1280 = vmatprep.subr.mxu0 0.0
        %1281 = vmatpush1.msra.mxu0 0.0
        %1282 = vmatprep.subr.mxu0 0.0
        %1283 = vmatpush1.msra.mxu0 0.0
        %1284 = vmatprep.subr.mxu0 0.0
        %1285 = vmatpush1.msra.mxu0 0.0
        %1286 = vmatprep.subr.mxu0 0.0
        %1287 = vmatpush1.msra.mxu0 0.0
        %1288 = vmatprep.subr.mxu0 0.0
        %1289 = vmatpush1.msra.mxu0 0.0
        %1290 = vmatprep.subr.mxu0 0.0
        %1291 = vmatpush1.msra.mxu0 0.0
        %1292 = vmatprep.subr.mxu0 0.0
        %1293 = vmatpush1.msra.mxu0 0.0
        %1294 = vmatprep.subr.mxu0 0.0
        %1295 = vmatpush1.msra.mxu0 0.0
        %1296 = vmatprep.subr.mxu0 0.0
        %1297 = vmatpush1.msra.mxu0 0.0
        %1298 = vmatprep.subr.mxu0 0.0
        %1299 = vmatpush1.msra.mxu0 0.0
        %1300 = vmatprep.subr.mxu0 0.0
        %1301 = vmatpush1.msra.mxu0 0.0
        %1302 = vmatprep.subr.mxu0 0.0
        %1303 = vmatpush1.msra.mxu0 0.0
        %1304 = vmatprep.mubr.f32.mxu0 0.0
        %1305 = vmatmul.mubr.f32.gmra.mrb[0].mxu0 %v1238
        %v1306 = vpop.f32.mrb[0].mxu0
        %v1307 = vadd.f32 0.0, %v1306
        %v1308 = vpop.f32.mrb[0].mxu0
        %1309 = vdwg.mxu0
        %1311 = vrot.lane.b32.xlu0 %v973, 16
        %v1312 = vpop.permute.xlu0 %1311
        %1315 = vrot.lane.b32.xlu0 %v1140, 32
        %v1316 = vpop.permute.xlu0 %1315
        %1319 = vrot.lane.b32.xlu0 %v1307, 48
        %v1320 = vpop.permute.xlu0 %1319
        %v1322 = vsel %vm642, %v806, %v1312
        %v1323 = vsel %vm559, %v1322, %v1316
        %vm1324 = vcmask 392192
        %v1325 = vsel %vm1324, %v1323, %v1320
        %v1326 = vld [vmem:[#allocation14] sm:$0xff]
        %v1327 = vld [vmem:[#allocation14 + $0x8] sm:$0xff]
        %v1328 = vld [vmem:[#allocation14 + $0x10] sm:$0xff]
        %v1329 = vld [vmem:[#allocation14 + $0x18] sm:$0xff]
        %v1330 = vld [vmem:[#allocation14 + $0x20] sm:$0xff]
        %v1331 = vld [vmem:[#allocation14 + $0x28] sm:$0xff]
        %v1332 = vld [vmem:[#allocation14 + $0x30] sm:$0xff]
        %v1333 = vld [vmem:[#allocation14 + $0x38] sm:$0xff]
        %v1334 = vld [vmem:[#allocation15] sm:$0x1]
        %v1336 = vlaneseq
        %v1337 = vshrl.u32 %v1336, 7
        %v1338 = vsub.s32 0, %v1337
        %v1339 = vrot.slane %v1334, %v1338
        %vm1341 = vcmask 523264
        %v1343 = vsel %vm1341, %v1325, 0
        %1345 = vmatprep.subr.mxu0 0.0
        %1346 = vmatpush1.msra.mxu0 %v1326
        %1347 = vmatprep.subr.mxu0 0.0
        %1348 = vmatpush1.msra.mxu0 %v1327
        %1349 = vmatprep.subr.mxu0 0.0
        %1350 = vmatpush1.msra.mxu0 %v1328
        %1351 = vmatprep.subr.mxu0 0.0
        %1352 = vmatpush1.msra.mxu0 %v1329
        %1353 = vmatprep.subr.mxu0 0.0
        %1354 = vmatpush1.msra.mxu0 %v1330
        %1355 = vmatprep.subr.mxu0 0.0
        %1356 = vmatpush1.msra.mxu0 %v1331
        %1357 = vmatprep.subr.mxu0 0.0
        %1358 = vmatpush1.msra.mxu0 %v1332
        %1359 = vmatprep.subr.mxu0 0.0
        %1360 = vmatpush1.msra.mxu0 %v1333
        %1361 = vmatprep.subr.mxu0 0.0
        %1362 = vmatpush1.msra.mxu0 0.0
        %1363 = vmatprep.subr.mxu0 0.0
        %1364 = vmatpush1.msra.mxu0 0.0
        %1365 = vmatprep.subr.mxu0 0.0
        %1366 = vmatpush1.msra.mxu0 0.0
        %1367 = vmatprep.subr.mxu0 0.0
        %1368 = vmatpush1.msra.mxu0 0.0
        %1369 = vmatprep.subr.mxu0 0.0
        %1370 = vmatpush1.msra.mxu0 0.0
        %1371 = vmatprep.subr.mxu0 0.0
        %1372 = vmatpush1.msra.mxu0 0.0
        %1373 = vmatprep.subr.mxu0 0.0
        %1374 = vmatpush1.msra.mxu0 0.0
        %1375 = vmatprep.subr.mxu0 0.0
        %1376 = vmatpush1.msra.mxu0 0.0
        %1377 = vmatprep.subr.mxu0 0.0
        %1378 = vmatpush1.msra.mxu0 0.0
        %1379 = vmatprep.subr.mxu0 0.0
        %1380 = vmatpush1.msra.mxu0 0.0
        %1381 = vmatprep.subr.mxu0 0.0
        %1382 = vmatpush1.msra.mxu0 0.0
        %1383 = vmatprep.subr.mxu0 0.0
        %1384 = vmatpush1.msra.mxu0 0.0
        %1385 = vmatprep.subr.mxu0 0.0
        %1386 = vmatpush1.msra.mxu0 0.0
        %1387 = vmatprep.subr.mxu0 0.0
        %1388 = vmatpush1.msra.mxu0 0.0
        %1389 = vmatprep.subr.mxu0 0.0
        %1390 = vmatpush1.msra.mxu0 0.0
        %1391 = vmatprep.subr.mxu0 0.0
        %1392 = vmatpush1.msra.mxu0 0.0
        %1393 = vmatprep.subr.mxu0 0.0
        %1394 = vmatpush1.msra.mxu0 0.0
        %1395 = vmatprep.subr.mxu0 0.0
        %1396 = vmatpush1.msra.mxu0 0.0
        %1397 = vmatprep.subr.mxu0 0.0
        %1398 = vmatpush1.msra.mxu0 0.0
        %1399 = vmatprep.subr.mxu0 0.0
        %1400 = vmatpush1.msra.mxu0 0.0
        %1401 = vmatprep.subr.mxu0 0.0
        %1402 = vmatpush1.msra.mxu0 0.0
        %1403 = vmatprep.subr.mxu0 0.0
        %1404 = vmatpush1.msra.mxu0 0.0
        %1405 = vmatprep.subr.mxu0 0.0
        %1406 = vmatpush1.msra.mxu0 0.0
        %1407 = vmatprep.subr.mxu0 0.0
        %1408 = vmatpush1.msra.mxu0 0.0
        %1409 = vmatprep.mubr.f32.mxu0 0.0
        %1410 = vmatmul.mubr.f32.gmra.mrb[0].mxu0 %v1343
        %v1411 = vpop.f32.mrb[0].mxu0
        %v1412 = vadd.f32 %v1339, %v1411
        %v1413 = vpop.f32.mrb[0].mxu0
        %1414 = vdwg.mxu0
        %1415 = vst.msk [vmem:[%s455] sm:$0xff] %vm559, %v1412
        %s1416 = sand.u32 %s233, 1
        %s1417 = scalar_lea.sflag [#allocation5], %s1416
        %s1418 = sand.u32 %s233, 1
        %s1419 = smul.addr %s1418, 8
        %s1420 = scalar_lea.vmem [#allocation17], %s1419
        // Predicated region
        $region89: #{tpu_custom_call.1} parent=51 // pred_check
          %p1421 = pneg %p243
        $region90: #{tpu_custom_call.1} parent=51 // pred_check_branch
          %1423 = sbr.rel (%p1421) target = $region92
        $region91: #{tpu_custom_call.1} parent=51 // pred_region
          %s1425 = ssub.s32 128, 128
          %1426 = vsyncadd %s1417, %s1425
          %s1427 = sadd.s32 %s36, %s35
          %s1428 = smul.addr %s1427, 128
          %s1429 = scalar_lea.hbm %s8, %s1428
          %s1431 = sshll.u32 %s1420, 4
          %s1432 = int_to_ptr.vmem [resolvable:$true] %s1431
          %1434 = dma.vmem_to_hbm [thread:$0]  %s1432, 128, %s1429, %s1417
        $region92: #{tpu_custom_call.1} parent=51 // pred_fallthru
          _
      $region52: #{tpu_custom_call.1} parent=5 // pred_fallthru
        _
      %p1435 = scmp.le.s32.totalorder 2, %s26
      // Predicated region
      $region93: #{tpu_custom_call.1} parent=5 // pred_check
        %p1436 = pneg %p1435
      $region94: #{tpu_custom_call.1} parent=5 // pred_check_branch
        %1438 = sbr.rel (%p1436) target = $region96
      $region95: #{tpu_custom_call.1} parent=5 // pred_region
        %s1439 = ssub.s32 %s26, 2
        // Predicated region
        $region97: #{tpu_custom_call.1} parent=95 // pred_check
          %p1440 = pneg %p249
        $region98: #{tpu_custom_call.1} parent=95 // pred_check_branch
          %1442 = sbr.rel (%p1440) target = $region100
        $region99: #{tpu_custom_call.1} parent=95 // pred_region
          %s1443 = sand.u32 %s234, 1
          %s1444 = scalar_lea.sflag [#allocation5], %s1443
          %s1445 = sand.u32 %s234, 1
          %s1446 = smul.addr %s1445, 8
          %s1447 = scalar_lea.vmem [#allocation17], %s1446
          %1448 = dma.done %s1444, 128
        $region100: #{tpu_custom_call.1} parent=95 // pred_fallthru
          _
      $region96: #{tpu_custom_call.1} parent=5 // pred_fallthru
        _
    $region6: #{tpu_custom_call.1} parent=1 // loop_footer
      %s30 = sadd.s32 1, %s26
    $region7: #{tpu_custom_call.1} parent=1 // loop_footer_branch
      %25 = sbr.rel target = $region3
    $region8: #{tpu_custom_call.1} parent=1 // loop_exit
      _
    %1449 = vsyncpa [#allocation4], 1
    %s1450 = scalar_lea.sflag [#allocation4], 1
    %1451 = vsyncpa %s1450, 1
    %1452 = vsyncpa [#allocation7], 1
    %s1453 = scalar_lea.sflag [#allocation7], 1
    %1454 = vsyncpa %s1453, 1
    %1455 = vsyncpa [#allocation10], 1
    %1456 = vsyncpa [#allocation13], 1
    %1457 = vsyncpa [#allocation16], 1
    %1458 = vsyncpa [#allocation5], 1
    %s1459 = scalar_lea.sflag [#allocation5], 1
    %1460 = vsyncpa %s1459, 1

</llo_original>
